<compile_context>
chip_gen: v6e
topology: v6e:2x2x1
jax: 0.10.0
libtpu: 0.0.40
codegen_flags: <defaults>
</compile_context>

<pallas_src>
import math

import jax
import jax.numpy as jnp
from jax import lax
from jax.experimental import pallas as pl
from jax.experimental.pallas import tpu as pltpu

# --- module constants (from ODEFunc1_6.__init__) -----------------------------
VRANGE = 100.0
NETSCALE = 1000.0
P5 = 0.08732437094329396
P6 = 0.007333800255491885
P7 = 0.0061655100719614575
P8 = 0.03157413109338753
LEAKY_SLOPE = 0.01  # nn.LeakyReLU default

# No fixed-form voltage protocol is set, so (as in the torch except-ValueError
# branch) v = -80 always.  Bake all v-dependent scalars in at trace time.
# TODO(synk): if set_fixed_form_voltage_protocol is ever used, v becomes
# time-dependent and NV/K3/K4 must be passed per step instead of baked in.
V_CONST = -80.0
NV_CONST = V_CONST / VRANGE                 # -0.8
K3 = P5 * math.exp(P6 * V_CONST)
K4 = P7 * math.exp(-P8 * V_CONST)

LAYER_DIMS = [2, 200, 200, 200, 200, 200, 200, 1]

# Padded widths: lane multiples of 128; hidden padded to 256 (v6e/v7x MXU width).
IN_PAD = 128    # packed input lanes: [nv, a, r, 0, ...]
HID_PAD = 256
OUT_PAD = 128   # kernel output lanes: [dadt, drdt, 0, ...]


def _round_up(x, m):
    return ((x + m - 1) // m) * m


# --- kernel -------------------------------------------------------------------
def odefunc_kernel(state_ref, *wb_and_out):
    """state_ref: (TM, 128) block, lanes = [nv, a, r, 0...].
    wb_and_out: w1, b1, ..., w7, b7 (padded, VMEM-resident), then out_ref."""
    wb_refs = wb_and_out[:-1]
    out_ref = wb_and_out[-1]
    n_layers = len(wb_refs) // 2

    h = state_ref[...]                        # (TM, 128)
    r = h[:, 2:3]                             # (TM, 1)

    # MLP hot path: 7 padded Linear layers, LeakyReLU between.  Zero-padded
    # weight rows/cols keep all pad lanes (including the r lane) at zero.
    for i in range(n_layers):
        w = wb_refs[2 * i][...]
        b = wb_refs[2 * i + 1][...]
        h = jnp.dot(h, w, preferred_element_type=jnp.float32) + b
        if i < n_layers - 1:
            # LeakyReLU(0.01): slope < 1 so max(h, 0.01*h) is exact.
            h = jnp.maximum(h, LEAKY_SLOPE * h)

    dadt = h * (1.0 / NETSCALE)               # (TM, 128); lane 0 real, rest 0
    drdt = K4 - (K3 + K4) * r                 # (TM, 1) == -k3*r + k4*(1-r)

    # Single lane-dense store: lane 0 = dadt, lane 1 = drdt, lanes 2.. = 0.
    lane = lax.broadcasted_iota(jnp.int32, dadt.shape, 1)
    out_ref[...] = jnp.where(lane == 1, drdt, dadt)


# --- parameters ----------------------------------------------------------------
def init_params(key):
    """Synthetic init matching torch: weight ~ N(0, 0.1), bias = 0.
    Stored as (in, out) = torch Linear.weight.T."""
    params = []
    for i in range(len(LAYER_DIMS) - 1):
        key, sub = jax.random.split(key)
        w = 0.1 * jax.random.normal(
            sub, (LAYER_DIMS[i], LAYER_DIMS[i + 1]), jnp.float32)
        b = jnp.zeros((LAYER_DIMS[i + 1],), jnp.float32)
        params.append((w, b))
    return params


def pad_params(params, dtype=jnp.float32):
    """Zero-pad (in, out) weights / biases to lane- and MXU-aligned shapes.
    Do this ONCE; the padded tensors are reused across all calls."""
    n = len(params)
    flat = []
    for i, (w, b) in enumerate(params):
        din, dout = w.shape
        in_pad = IN_PAD if i == 0 else HID_PAD
        out_pad = OUT_PAD if i == n - 1 else HID_PAD
        w_p = jnp.zeros((in_pad, out_pad), dtype).at[:din, :dout].set(w.astype(dtype))
        b_p = jnp.zeros((1, out_pad), dtype).at[:, :dout].set(b.astype(dtype))
        flat.extend([w_p, b_p])
    return flat


# --- wrapper --------------------------------------------------------------------
def ode_func_1_6(t, y, padded_params, *, tm=None):
    """Batched forward of ODEFunc1_6.

    y: (M, 2) rows of [a, r]  ->  returns (M, 2) rows of [dadt, drdt].
    Per-row semantics match the torch module's forward on a single (1, 2) state
    (voltage protocol unset -> v = -80).
    """
    del t  # only enters via the (unset) voltage protocol; v = -80 is baked in
    y = jnp.asarray(y, jnp.float32)
    m = y.shape[0]

    if tm is None:
        tm = min(128, _round_up(m, 8))
    m_pad = _round_up(max(m, tm), tm)

    # Pack [nv, a, r] into a single lane-dense (m_pad, 128) array.
    state = jnp.zeros((m_pad, IN_PAD), jnp.float32)
    state = state.at[:m, 0].set(NV_CONST)
    state = state.at[:m, 1].set(y[:, 0])
    state = state.at[:m, 2].set(y[:, 1])

    grid = (m_pad // tm,)
    weight_specs = [
        pl.BlockSpec(p.shape, lambda i: (0, 0)) for p in padded_params
    ]

    out = pl.pallas_call(
        odefunc_kernel,
        out_shape=jax.ShapeDtypeStruct((m_pad, OUT_PAD), jnp.float32),
        grid_spec=pltpu.PrefetchScalarGridSpec(
            num_scalar_prefetch=0,
            grid=grid,
            in_specs=[pl.BlockSpec((tm, IN_PAD), lambda i: (i, 0))] + weight_specs,
            out_specs=pl.BlockSpec((tm, OUT_PAD), lambda i: (i, 0)),
        ),
        compiler_params=pltpu.CompilerParams(
            # Batch tiles are independent -> shard across v7x's two TCs.
            dimension_semantics=("parallel",),
        ),
    )(state, *padded_params)

    return out[:m, :2]


# --- pure-JAX reference ----------------------------------------------------------
def ode_func_1_6_ref(t, y, params):
    del t
    y = jnp.asarray(y, jnp.float32)
    a = y[:, 0:1]
    r = y[:, 1:2]
    v = jnp.float32(V_CONST)
    nv = v / VRANGE
    h = jnp.concatenate([jnp.full_like(a, nv), a], axis=1)
    for i, (w, b) in enumerate(params):
        h = jnp.dot(h, w, precision=lax.Precision.HIGHEST) + b
        if i < len(params) - 1:
            h = jnp.maximum(h, LEAKY_SLOPE * h)
    dadt = h / NETSCALE
    k3 = P5 * jnp.exp(P6 * v)
    k4 = P7 * jnp.exp(-P8 * v)
    drdt = -k3 * r + k4 * (1.0 - r)
    return jnp.concatenate([dadt, drdt], axis=1)


if __name__ == "__main__":
    key = jax.random.PRNGKey(0)
    k_y, k_p = jax.random.split(key)

    params = init_params(k_p)
    padded = pad_params(params)          # pad once, reuse for every call

    # Small batch of states, rows = [a, r] in [0, 1).  tm=8 with m=16 gives a
    # 2-step grid, exercising weight residency across grid iterations.
    m = 16
    y = jax.random.uniform(k_y, (m, 2), dtype=jnp.float32)
    t = jnp.float32(0.0)

    out = jax.block_until_ready(ode_func_1_6(t, y, padded, tm=8))
    ref = ode_func_1_6_ref(t, y, params)
    assert out.shape == (m, 2), out.shape
    assert jnp.allclose(out, ref, atol=1e-5, rtol=5e-4), (
        float(jnp.max(jnp.abs(out - ref))))

    # Original-module shape: a single (1, 2) state.
    y1 = y[:1]
    out1 = jax.block_until_ready(ode_func_1_6(t, y1, padded))
    assert out1.shape == (1, 2), out1.shape
    assert jnp.allclose(out1, ref[:1], atol=1e-5, rtol=5e-4)

    print("KERNEL_OK")
</pallas_src>

<mosaic_0001>
module attributes {stable_mosaic.version = 11 : i64} {
  func.func @odefunc_kernel(%arg0: i32, %arg1: memref<8x128xf32, #tpu.memory_space<vmem>>, %arg2: memref<128x256xf32, #tpu.memory_space<vmem>>, %arg3: memref<1x256xf32, #tpu.memory_space<vmem>>, %arg4: memref<256x256xf32, #tpu.memory_space<vmem>>, %arg5: memref<1x256xf32, #tpu.memory_space<vmem>>, %arg6: memref<256x256xf32, #tpu.memory_space<vmem>>, %arg7: memref<1x256xf32, #tpu.memory_space<vmem>>, %arg8: memref<256x256xf32, #tpu.memory_space<vmem>>, %arg9: memref<1x256xf32, #tpu.memory_space<vmem>>, %arg10: memref<256x256xf32, #tpu.memory_space<vmem>>, %arg11: memref<1x256xf32, #tpu.memory_space<vmem>>, %arg12: memref<256x256xf32, #tpu.memory_space<vmem>>, %arg13: memref<1x256xf32, #tpu.memory_space<vmem>>, %arg14: memref<256x128xf32, #tpu.memory_space<vmem>>, %arg15: memref<1x128xf32, #tpu.memory_space<vmem>>, %arg16: memref<8x128xf32, #tpu.memory_space<vmem>>) attributes {dimension_semantics = [#tpu.dimension_semantics<parallel>], iteration_bounds = array<i64: 2>, scalar_prefetch = 0 : i64, scratch_operands = 0 : i64, tpu.core_type = #tpu.core_type<tc>, window_params = [{transform_indices = @transform_0, window_bounds = array<i64: 8, 128>}, {pipeline_mode = #tpu.pipeline_mode<synchronous>, transform_indices = @transform_1, window_bounds = array<i64: 128, 256>}, {pipeline_mode = #tpu.pipeline_mode<synchronous>, transform_indices = @transform_2, window_bounds = array<i64: 1, 256>}, {pipeline_mode = #tpu.pipeline_mode<synchronous>, transform_indices = @transform_3, window_bounds = array<i64: 256, 256>}, {pipeline_mode = #tpu.pipeline_mode<synchronous>, transform_indices = @transform_4, window_bounds = array<i64: 1, 256>}, {pipeline_mode = #tpu.pipeline_mode<synchronous>, transform_indices = @transform_5, window_bounds = array<i64: 256, 256>}, {pipeline_mode = #tpu.pipeline_mode<synchronous>, transform_indices = @transform_6, window_bounds = array<i64: 1, 256>}, {pipeline_mode = #tpu.pipeline_mode<synchronous>, transform_indices = @transform_7, window_bounds = array<i64: 256, 256>}, {pipeline_mode = #tpu.pipeline_mode<synchronous>, transform_indices = @transform_8, window_bounds = array<i64: 1, 256>}, {pipeline_mode = #tpu.pipeline_mode<synchronous>, transform_indices = @transform_9, window_bounds = array<i64: 256, 256>}, {pipeline_mode = #tpu.pipeline_mode<synchronous>, transform_indices = @transform_10, window_bounds = array<i64: 1, 256>}, {pipeline_mode = #tpu.pipeline_mode<synchronous>, transform_indices = @transform_11, window_bounds = array<i64: 256, 256>}, {pipeline_mode = #tpu.pipeline_mode<synchronous>, transform_indices = @transform_12, window_bounds = array<i64: 1, 256>}, {pipeline_mode = #tpu.pipeline_mode<synchronous>, transform_indices = @transform_13, window_bounds = array<i64: 256, 128>}, {pipeline_mode = #tpu.pipeline_mode<synchronous>, transform_indices = @transform_14, window_bounds = array<i64: 1, 128>}, {transform_indices = @transform_15, window_bounds = array<i64: 8, 128>}]} {
    %c0 = arith.constant 0 : index
    %c0_0 = arith.constant 0 : index
    %0 = vector.load %arg1[%c0, %c0_0] : memref<8x128xf32, #tpu.memory_space<vmem>>, vector<8x128xf32>
    %1 = vector.extract_strided_slice %0 {offsets = [0, 2], sizes = [8, 1], strides = [1, 1]} : vector<8x128xf32> to vector<8x1xf32>
    %c0_1 = arith.constant 0 : index
    %c0_2 = arith.constant 0 : index
    %2 = vector.load %arg2[%c0_1, %c0_2] : memref<128x256xf32, #tpu.memory_space<vmem>>, vector<128x256xf32>
    %c0_3 = arith.constant 0 : index
    %c0_4 = arith.constant 0 : index
    %3 = vector.load %arg3[%c0_3, %c0_4] : memref<1x256xf32, #tpu.memory_space<vmem>>, vector<1x256xf32>
    %cst = arith.constant dense<0.000000e+00> : vector<8x256xf32>
    %4 = tpu.matmul %0, %2, %cst {dimension_numbers = #tpu.dot_dimension_numbers<[1], [0], [0], [1], [0, 0, 1, 1], [], []>} : vector<8x128xf32>, vector<128x256xf32>, vector<8x256xf32> -> vector<8x256xf32>
    %5 = vector.broadcast %3 : vector<1x256xf32> to vector<8x256xf32>
    %6 = arith.addf %4, %5 : vector<8x256xf32>
    %cst_5 = arith.constant 0.00999999977 : f32
    %7 = vector.broadcast %cst_5 : f32 to vector<8x256xf32>
    %8 = arith.mulf %7, %6 : vector<8x256xf32>
    %9 = arith.maximumf %6, %8 : vector<8x256xf32>
    %c0_6 = arith.constant 0 : index
    %c0_7 = arith.constant 0 : index
    %10 = vector.load %arg4[%c0_6, %c0_7] : memref<256x256xf32, #tpu.memory_space<vmem>>, vector<256x256xf32>
    %c0_8 = arith.constant 0 : index
    %c0_9 = arith.constant 0 : index
    %11 = vector.load %arg5[%c0_8, %c0_9] : memref<1x256xf32, #tpu.memory_space<vmem>>, vector<1x256xf32>
    %cst_10 = arith.constant dense<0.000000e+00> : vector<8x256xf32>
    %12 = tpu.matmul %9, %10, %cst_10 {dimension_numbers = #tpu.dot_dimension_numbers<[1], [0], [0], [1], [0, 0, 1, 1], [], []>} : vector<8x256xf32>, vector<256x256xf32>, vector<8x256xf32> -> vector<8x256xf32>
    %13 = vector.broadcast %11 : vector<1x256xf32> to vector<8x256xf32>
    %14 = arith.addf %12, %13 : vector<8x256xf32>
    %cst_11 = arith.constant 0.00999999977 : f32
    %15 = vector.broadcast %cst_11 : f32 to vector<8x256xf32>
    %16 = arith.mulf %15, %14 : vector<8x256xf32>
    %17 = arith.maximumf %14, %16 : vector<8x256xf32>
    %c0_12 = arith.constant 0 : index
    %c0_13 = arith.constant 0 : index
    %18 = vector.load %arg6[%c0_12, %c0_13] : memref<256x256xf32, #tpu.memory_space<vmem>>, vector<256x256xf32>
    %c0_14 = arith.constant 0 : index
    %c0_15 = arith.constant 0 : index
    %19 = vector.load %arg7[%c0_14, %c0_15] : memref<1x256xf32, #tpu.memory_space<vmem>>, vector<1x256xf32>
    %cst_16 = arith.constant dense<0.000000e+00> : vector<8x256xf32>
    %20 = tpu.matmul %17, %18, %cst_16 {dimension_numbers = #tpu.dot_dimension_numbers<[1], [0], [0], [1], [0, 0, 1, 1], [], []>} : vector<8x256xf32>, vector<256x256xf32>, vector<8x256xf32> -> vector<8x256xf32>
    %21 = vector.broadcast %19 : vector<1x256xf32> to vector<8x256xf32>
    %22 = arith.addf %20, %21 : vector<8x256xf32>
    %cst_17 = arith.constant 0.00999999977 : f32
    %23 = vector.broadcast %cst_17 : f32 to vector<8x256xf32>
    %24 = arith.mulf %23, %22 : vector<8x256xf32>
    %25 = arith.maximumf %22, %24 : vector<8x256xf32>
    %c0_18 = arith.constant 0 : index
    %c0_19 = arith.constant 0 : index
    %26 = vector.load %arg8[%c0_18, %c0_19] : memref<256x256xf32, #tpu.memory_space<vmem>>, vector<256x256xf32>
    %c0_20 = arith.constant 0 : index
    %c0_21 = arith.constant 0 : index
    %27 = vector.load %arg9[%c0_20, %c0_21] : memref<1x256xf32, #tpu.memory_space<vmem>>, vector<1x256xf32>
    %cst_22 = arith.constant dense<0.000000e+00> : vector<8x256xf32>
    %28 = tpu.matmul %25, %26, %cst_22 {dimension_numbers = #tpu.dot_dimension_numbers<[1], [0], [0], [1], [0, 0, 1, 1], [], []>} : vector<8x256xf32>, vector<256x256xf32>, vector<8x256xf32> -> vector<8x256xf32>
    %29 = vector.broadcast %27 : vector<1x256xf32> to vector<8x256xf32>
    %30 = arith.addf %28, %29 : vector<8x256xf32>
    %cst_23 = arith.constant 0.00999999977 : f32
    %31 = vector.broadcast %cst_23 : f32 to vector<8x256xf32>
    %32 = arith.mulf %31, %30 : vector<8x256xf32>
    %33 = arith.maximumf %30, %32 : vector<8x256xf32>
    %c0_24 = arith.constant 0 : index
    %c0_25 = arith.constant 0 : index
    %34 = vector.load %arg10[%c0_24, %c0_25] : memref<256x256xf32, #tpu.memory_space<vmem>>, vector<256x256xf32>
    %c0_26 = arith.constant 0 : index
    %c0_27 = arith.constant 0 : index
    %35 = vector.load %arg11[%c0_26, %c0_27] : memref<1x256xf32, #tpu.memory_space<vmem>>, vector<1x256xf32>
    %cst_28 = arith.constant dense<0.000000e+00> : vector<8x256xf32>
    %36 = tpu.matmul %33, %34, %cst_28 {dimension_numbers = #tpu.dot_dimension_numbers<[1], [0], [0], [1], [0, 0, 1, 1], [], []>} : vector<8x256xf32>, vector<256x256xf32>, vector<8x256xf32> -> vector<8x256xf32>
    %37 = vector.broadcast %35 : vector<1x256xf32> to vector<8x256xf32>
    %38 = arith.addf %36, %37 : vector<8x256xf32>
    %cst_29 = arith.constant 0.00999999977 : f32
    %39 = vector.broadcast %cst_29 : f32 to vector<8x256xf32>
    %40 = arith.mulf %39, %38 : vector<8x256xf32>
    %41 = arith.maximumf %38, %40 : vector<8x256xf32>
    %c0_30 = arith.constant 0 : index
    %c0_31 = arith.constant 0 : index
    %42 = vector.load %arg12[%c0_30, %c0_31] : memref<256x256xf32, #tpu.memory_space<vmem>>, vector<256x256xf32>
    %c0_32 = arith.constant 0 : index
    %c0_33 = arith.constant 0 : index
    %43 = vector.load %arg13[%c0_32, %c0_33] : memref<1x256xf32, #tpu.memory_space<vmem>>, vector<1x256xf32>
    %cst_34 = arith.constant dense<0.000000e+00> : vector<8x256xf32>
    %44 = tpu.matmul %41, %42, %cst_34 {dimension_numbers = #tpu.dot_dimension_numbers<[1], [0], [0], [1], [0, 0, 1, 1], [], []>} : vector<8x256xf32>, vector<256x256xf32>, vector<8x256xf32> -> vector<8x256xf32>
    %45 = vector.broadcast %43 : vector<1x256xf32> to vector<8x256xf32>
    %46 = arith.addf %44, %45 : vector<8x256xf32>
    %cst_35 = arith.constant 0.00999999977 : f32
    %47 = vector.broadcast %cst_35 : f32 to vector<8x256xf32>
    %48 = arith.mulf %47, %46 : vector<8x256xf32>
    %49 = arith.maximumf %46, %48 : vector<8x256xf32>
    %c0_36 = arith.constant 0 : index
    %c0_37 = arith.constant 0 : index
    %50 = vector.load %arg14[%c0_36, %c0_37] : memref<256x128xf32, #tpu.memory_space<vmem>>, vector<256x128xf32>
    %c0_38 = arith.constant 0 : index
    %c0_39 = arith.constant 0 : index
    %51 = vector.load %arg15[%c0_38, %c0_39] : memref<1x128xf32, #tpu.memory_space<vmem>>, vector<1x128xf32>
    %cst_40 = arith.constant dense<0.000000e+00> : vector<8x128xf32>
    %52 = tpu.matmul %49, %50, %cst_40 {dimension_numbers = #tpu.dot_dimension_numbers<[1], [0], [0], [1], [0, 0, 1, 1], [], []>} : vector<8x256xf32>, vector<256x128xf32>, vector<8x128xf32> -> vector<8x128xf32>
    %53 = vector.broadcast %51 : vector<1x128xf32> to vector<8x128xf32>
    %54 = arith.addf %52, %53 : vector<8x128xf32>
    %cst_41 = arith.constant 1.000000e-03 : f32
    %55 = vector.broadcast %cst_41 : f32 to vector<8x128xf32>
    %56 = arith.mulf %54, %55 : vector<8x128xf32>
    %cst_42 = arith.constant 0.125650525 : f32
    %57 = vector.broadcast %cst_42 : f32 to vector<8x1xf32>
    %58 = arith.mulf %57, %1 : vector<8x1xf32>
    %cst_43 = arith.constant 0.077084437 : f32
    %59 = vector.broadcast %cst_43 : f32 to vector<8x1xf32>
    %60 = arith.subf %59, %58 : vector<8x1xf32>
    %61 = tpu.iota {dimensions = array<i32: 1>} : vector<8x128xi32>
    %c1_i32 = arith.constant 1 : i32
    %62 = vector.broadcast %c1_i32 : i32 to vector<8x128xi32>
    %63 = arith.cmpi eq, %61, %62 : vector<8x128xi32>
    %64 = vector.shape_cast %60 : vector<8x1xf32> to vector<8x1xf32>
    %65 = vector.broadcast %64 : vector<8x1xf32> to vector<8x128xf32>
    %66 = arith.select %63, %65, %56 : vector<8x128xi1>, vector<8x128xf32>
    %c0_44 = arith.constant 0 : index
    %c0_45 = arith.constant 0 : index
    %67 = vector.load %arg16[%c0_44, %c0_45] : memref<8x128xf32, #tpu.memory_space<vmem>>, vector<8x128xf32>
    tpu.vector_store %arg16[%c0_44, %c0_45], %66 {strides = array<i32>} : memref<8x128xf32, #tpu.memory_space<vmem>>, vector<8x128xf32>,
    return
  }
  func.func @transform_0(%arg0: i32) -> (i32, i32) {
    %c0_i32 = arith.constant 0 : i32
    %c0_i32_0 = arith.constant 0 : i32
    return %arg0, %c0_i32 : i32, i32
  }
  func.func @transform_1(%arg0: i32) -> (i32, i32) {
    %c0_i32 = arith.constant 0 : i32
    %c0_i32_0 = arith.constant 0 : i32
    %c0_i32_1 = arith.constant 0 : i32
    return %c0_i32, %c0_i32_0 : i32, i32
  }
  func.func @transform_2(%arg0: i32) -> (i32, i32) {
    %c0_i32 = arith.constant 0 : i32
    %c0_i32_0 = arith.constant 0 : i32
    %c0_i32_1 = arith.constant 0 : i32
    return %c0_i32, %c0_i32_0 : i32, i32
  }
  func.func @transform_3(%arg0: i32) -> (i32, i32) {
    %c0_i32 = arith.constant 0 : i32
    %c0_i32_0 = arith.constant 0 : i32
    %c0_i32_1 = arith.constant 0 : i32
    return %c0_i32, %c0_i32_0 : i32, i32
  }
  func.func @transform_4(%arg0: i32) -> (i32, i32) {
    %c0_i32 = arith.constant 0 : i32
    %c0_i32_0 = arith.constant 0 : i32
    %c0_i32_1 = arith.constant 0 : i32
    return %c0_i32, %c0_i32_0 : i32, i32
  }
  func.func @transform_5(%arg0: i32) -> (i32, i32) {
    %c0_i32 = arith.constant 0 : i32
    %c0_i32_0 = arith.constant 0 : i32
    %c0_i32_1 = arith.constant 0 : i32
    return %c0_i32, %c0_i32_0 : i32, i32
  }
  func.func @transform_6(%arg0: i32) -> (i32, i32) {
    %c0_i32 = arith.constant 0 : i32
    %c0_i32_0 = arith.constant 0 : i32
    %c0_i32_1 = arith.constant 0 : i32
    return %c0_i32, %c0_i32_0 : i32, i32
  }
  func.func @transform_7(%arg0: i32) -> (i32, i32) {
    %c0_i32 = arith.constant 0 : i32
    %c0_i32_0 = arith.constant 0 : i32
    %c0_i32_1 = arith.constant 0 : i32
    return %c0_i32, %c0_i32_0 : i32, i32
  }
  func.func @transform_8(%arg0: i32) -> (i32, i32) {
    %c0_i32 = arith.constant 0 : i32
    %c0_i32_0 = arith.constant 0 : i32
    %c0_i32_1 = arith.constant 0 : i32
    return %c0_i32, %c0_i32_0 : i32, i32
  }
  func.func @transform_9(%arg0: i32) -> (i32, i32) {
    %c0_i32 = arith.constant 0 : i32
    %c0_i32_0 = arith.constant 0 : i32
    %c0_i32_1 = arith.constant 0 : i32
    return %c0_i32, %c0_i32_0 : i32, i32
  }
  func.func @transform_10(%arg0: i32) -> (i32, i32) {
    %c0_i32 = arith.constant 0 : i32
    %c0_i32_0 = arith.constant 0 : i32
    %c0_i32_1 = arith.constant 0 : i32
    return %c0_i32, %c0_i32_0 : i32, i32
  }
  func.func @transform_11(%arg0: i32) -> (i32, i32) {
    %c0_i32 = arith.constant 0 : i32
    %c0_i32_0 = arith.constant 0 : i32
    %c0_i32_1 = arith.constant 0 : i32
    return %c0_i32, %c0_i32_0 : i32, i32
  }
  func.func @transform_12(%arg0: i32) -> (i32, i32) {
    %c0_i32 = arith.constant 0 : i32
    %c0_i32_0 = arith.constant 0 : i32
    %c0_i32_1 = arith.constant 0 : i32
    return %c0_i32, %c0_i32_0 : i32, i32
  }
  func.func @transform_13(%arg0: i32) -> (i32, i32) {
    %c0_i32 = arith.constant 0 : i32
    %c0_i32_0 = arith.constant 0 : i32
    %c0_i32_1 = arith.constant 0 : i32
    return %c0_i32, %c0_i32_0 : i32, i32
  }
  func.func @transform_14(%arg0: i32) -> (i32, i32) {
    %c0_i32 = arith.constant 0 : i32
    %c0_i32_0 = arith.constant 0 : i32
    %c0_i32_1 = arith.constant 0 : i32
    return %c0_i32, %c0_i32_0 : i32, i32
  }
  func.func @transform_15(%arg0: i32) -> (i32, i32) {
    %c0_i32 = arith.constant 0 : i32
    %c0_i32_0 = arith.constant 0 : i32
    return %arg0, %c0_i32 : i32, i32
  }
}

</mosaic_0001>

<llo_original>
// kernel: tpu_custom_call.1
$region0: #{tpu_custom_call.1}
  #allocation0 [shape = 'u32[]', space=smem, size = 0x4, offset = 0x4, fixed_abs, tag = 'smem constant byte address 0x4 - core index']
  #allocation1 [shape = 'u32[144,128]{1,0:T(1,128)}', space=vmem, size = 0x12000, scoped, tag = 'internal scratch']
  %s0 = inlined_call_operand.hbm [shape: f32[16,128], index: 0, kind: input, shape index: {}]
  %s1 = inlined_call_operand.hbm [shape: f32[128,256], index: 1, kind: input, shape index: {}]
  %s2 = inlined_call_operand.vmem [shape: f32[1,256], index: 2, kind: input, shape index: {}]
  %s3 = inlined_call_operand.hbm [shape: f32[256,256], index: 3, kind: input, shape index: {}]
  %s4 = inlined_call_operand.vmem [shape: f32[1,256], index: 4, kind: input, shape index: {}]
  %s5 = inlined_call_operand.hbm [shape: f32[256,256], index: 5, kind: input, shape index: {}]
  %s6 = inlined_call_operand.vmem [shape: f32[1,256], index: 6, kind: input, shape index: {}]
  %s7 = inlined_call_operand.hbm [shape: f32[256,256], index: 7, kind: input, shape index: {}]
  %s8 = inlined_call_operand.vmem [shape: f32[1,256], index: 8, kind: input, shape index: {}]
  %s9 = inlined_call_operand.hbm [shape: f32[256,256], index: 9, kind: input, shape index: {}]
  %s10 = inlined_call_operand.vmem [shape: f32[1,256], index: 10, kind: input, shape index: {}]
  %s11 = inlined_call_operand.hbm [shape: f32[256,256], index: 11, kind: input, shape index: {}]
  %s12 = inlined_call_operand.vmem [shape: f32[1,256], index: 12, kind: input, shape index: {}]
  %s13 = inlined_call_operand.hbm [shape: f32[256,128], index: 13, kind: input, shape index: {}]
  %s14 = inlined_call_operand.vmem [shape: f32[1,128], index: 14, kind: input, shape index: {}]
  %s15 = inlined_call_operand.hbm [shape: f32[16,128], index: 15, kind: output, shape index: {}]
  %s16 = sld [smem:[#allocation0]]
  $region125: #{tpu_custom_call.1} parent=0
    _
  %s18 = ssub.s32 1, %s16
  %s19 = scalar_select 0, %s18, %s16
  $region1: #{tpu_custom_call.1} parent=0
    #allocation2 [shape = 'u8[8192]{0}', space=vmem, size = 0x2000, scoped, tag = 'input window, operand 0']
    #allocation3 [shape = 's32[2]{0}', space=sflag, size = 0x8, scoped, tag = 'scoped memory for tpu_custom_call.1']
    #allocation4 [shape = 's32[2]{0}', space=sflag, size = 0x8, scoped, tag = 'scoped memory for tpu_custom_call.1']
    #allocation5 [shape = 'u8[131072]{0}', space=vmem, size = 0x20000, scoped, tag = 'input window, operand 1, single buffered']
    #allocation6 [shape = 's32[1]{0}', space=sflag, size = 0x4, scoped, tag = 'scoped memory for tpu_custom_call.1']
    #allocation7 [shape = 'u8[262144]{0}', space=vmem, size = 0x40000, scoped, tag = 'input window, operand 3, single buffered']
    #allocation8 [shape = 'u8[262144]{0}', space=vmem, size = 0x40000, scoped, tag = 'input window, operand 5, single buffered']
    #allocation9 [shape = 's32[1]{0}', space=sflag, size = 0x4, scoped, tag = 'scoped memory for tpu_custom_call.1']
    #allocation10 [shape = 'u8[262144]{0}', space=vmem, size = 0x40000, scoped, tag = 'input window, operand 7, single buffered']
    #allocation11 [shape = 'u8[262144]{0}', space=vmem, size = 0x40000, scoped, tag = 'input window, operand 9, single buffered']
    #allocation12 [shape = 's32[1]{0}', space=sflag, size = 0x4, scoped, tag = 'scoped memory for tpu_custom_call.1']
    #allocation13 [shape = 'u8[262144]{0}', space=vmem, size = 0x40000, scoped, tag = 'input window, operand 11, single buffered']
    #allocation14 [shape = 'u8[131072]{0}', space=vmem, size = 0x20000, scoped, tag = 'input window, operand 13, single buffered']
    #allocation15 [shape = 's32[1]{0}', space=sflag, size = 0x4, scoped, tag = 'scoped memory for tpu_custom_call.1']
    #allocation16 [shape = 'u8[8192]{0}', space=vmem, size = 0x2000, scoped, tag = 'output window, operand 0']
    %20 = vsyncpa [#allocation3], 0
    %s21 = scalar_lea.sflag [#allocation3], 1
    %22 = vsyncpa %s21, 0
    %23 = vsyncpa [#allocation6], 0
    %24 = vsyncpa [#allocation9], 0
    %25 = vsyncpa [#allocation12], 0
    %26 = vsyncpa [#allocation15], 0
    %27 = vsyncpa [#allocation4], 0
    %s28 = scalar_lea.sflag [#allocation4], 1
    %29 = vsyncpa %s28, 0
    loop: start=0, step=1, limit=4
    $region2: #{tpu_custom_call.1} parent=1 // loop_pre_header
      _
    $region3: #{tpu_custom_call.1} parent=1 // loop_header
      %s31 = sphi 0, %s35
      %p32 = scmp.ge.s32.totalorder %s31, 4
      %s41 = sphi 0, %s43
      %s44 = sphi 0, %s41
      %s45 = sphi 0, %s44
      %s61 = sphi 0, %s45
      %s65 = sphi 0, %s65
      %s67 = sphi 0, %s65
      %s68 = sphi 0, %s67
      %s82 = sphi 0, %s68
      %s86 = sphi 0, %s86
      %s88 = sphi 0, %s86
      %s89 = sphi 0, %s88
      %s103 = sphi 0, %s89
      %s107 = sphi 0, %s107
      %s109 = sphi 0, %s107
      %s110 = sphi 0, %s109
      %s124 = sphi 0, %s110
      %s128 = sphi 0, %s128
      %s130 = sphi 0, %s128
      %s131 = sphi 0, %s130
      %s145 = sphi 0, %s131
      %s149 = sphi 0, %s149
      %s151 = sphi 0, %s149
      %s152 = sphi 0, %s151
      %s166 = sphi 0, %s152
      %s170 = sphi 0, %s170
      %s172 = sphi 0, %s170
      %s173 = sphi 0, %s172
      %s187 = sphi 0, %s173
      %s191 = sphi 0, %s191
      %s193 = sphi 0, %s191
      %s194 = sphi 0, %s193
      %s208 = sphi 0, %s194
      %s212 = sphi 0, %s212
      %s214 = sphi 0, %s212
      %s215 = sphi 0, %s214
      %s229 = sphi 0, %s215
      %s233 = sphi 0, %s233
      %s235 = sphi 0, %s233
      %s236 = sphi 0, %s235
      %s250 = sphi 0, %s236
      %s254 = sphi 0, %s254
      %s256 = sphi 0, %s254
      %s257 = sphi 0, %s256
      %s271 = sphi 0, %s257
      %s275 = sphi 0, %s275
      %s277 = sphi 0, %s275
      %s278 = sphi 0, %s277
      %s292 = sphi 0, %s278
      %s296 = sphi 0, %s296
      %s298 = sphi 0, %s296
      %s299 = sphi 0, %s298
      %s313 = sphi 0, %s299
      %s317 = sphi 0, %s317
      %s319 = sphi 0, %s317
      %s320 = sphi 0, %s319
      %s334 = sphi 0, %s320
      %s338 = sphi 0, %s338
      %s340 = sphi 0, %s338
      %s341 = sphi 0, %s340
      %s355 = sphi 0, %s341
      %s361 = sphi 0, %s363
      %s364 = sphi 0, %s361
      %s365 = sphi 0, %s364
      %s381 = sphi 0, %s365
    $region4: #{tpu_custom_call.1} parent=1 // loop_header_branch
      %34 = sbr.rel (%p32) target = $region8
    $region5: #{tpu_custom_call.1} parent=1 // loop_body
      %s36 = ssub.s32 %s31, 1
      %s37 = ssub.s32 %s31, 2
      %s38 = sadd.s32 %s31, 1
      %s39 = ssub.s32 %s31, %s38
      %p40 = scmp.eq.s32.totalorder %s39, 0
      %s42 = sadd.s32 %s41, 1
      %s43 = scalar_select %p40, %s41, %s42
      %p46 = pneg %p40
      %p47 = scmp.eq.s32.totalorder %s31, 1
      %p48 = por %p46, %p47
      %p49 = scmp.ne.s32.totalorder %s41, %s44
      %p50 = scmp.eq.s32.totalorder %s31, 0
      %p51 = por %p49, %p50
      %p52 = scmp.ne.s32.totalorder %s41, %s44
      %p53 = scmp.eq.s32.totalorder %s36, 1
      %p54 = por %p52, %p53
      %p55 = scmp.ne.s32.totalorder %s44, %s45
      %p56 = scmp.eq.s32.totalorder %s36, 0
      %p57 = por %p55, %p56
      %p58 = scmp.ne.s32.totalorder %s44, %s45
      %p59 = scmp.eq.s32.totalorder %s37, 1
      %p60 = por %p58, %p59
      %p62 = scmp.ne.s32.totalorder %s45, %s61
      %p63 = scmp.eq.s32.totalorder %s37, 0
      %p64 = por %p62, %p63
      %s66 = sadd.s32 %s65, 1
      %p69 = scmp.eq.s32.totalorder %s31, 1
      %p70 = scmp.ne.s32.totalorder %s65, %s67
      %p71 = scmp.eq.s32.totalorder %s31, 0
      %p72 = por %p70, %p71
      %p73 = scmp.ne.s32.totalorder %s65, %s67
      %p74 = scmp.eq.s32.totalorder %s36, 1
      %p75 = por %p73, %p74
      %p76 = scmp.ne.s32.totalorder %s67, %s68
      %p77 = scmp.eq.s32.totalorder %s36, 0
      %p78 = por %p76, %p77
      %p79 = scmp.ne.s32.totalorder %s67, %s68
      %p80 = scmp.eq.s32.totalorder %s37, 1
      %p81 = por %p79, %p80
      %p83 = scmp.ne.s32.totalorder %s68, %s82
      %p84 = scmp.eq.s32.totalorder %s37, 0
      %p85 = por %p83, %p84
      %s87 = sadd.s32 %s86, 1
      %p90 = scmp.eq.s32.totalorder %s31, 1
      %p91 = scmp.ne.s32.totalorder %s86, %s88
      %p92 = scmp.eq.s32.totalorder %s31, 0
      %p93 = por %p91, %p92
      %p94 = scmp.ne.s32.totalorder %s86, %s88
      %p95 = scmp.eq.s32.totalorder %s36, 1
      %p96 = por %p94, %p95
      %p97 = scmp.ne.s32.totalorder %s88, %s89
      %p98 = scmp.eq.s32.totalorder %s36, 0
      %p99 = por %p97, %p98
      %p100 = scmp.ne.s32.totalorder %s88, %s89
      %p101 = scmp.eq.s32.totalorder %s37, 1
      %p102 = por %p100, %p101
      %p104 = scmp.ne.s32.totalorder %s89, %s103
      %p105 = scmp.eq.s32.totalorder %s37, 0
      %p106 = por %p104, %p105
      %s108 = sadd.s32 %s107, 1
      %p111 = scmp.eq.s32.totalorder %s31, 1
      %p112 = scmp.ne.s32.totalorder %s107, %s109
      %p113 = scmp.eq.s32.totalorder %s31, 0
      %p114 = por %p112, %p113
      %p115 = scmp.ne.s32.totalorder %s107, %s109
      %p116 = scmp.eq.s32.totalorder %s36, 1
      %p117 = por %p115, %p116
      %p118 = scmp.ne.s32.totalorder %s109, %s110
      %p119 = scmp.eq.s32.totalorder %s36, 0
      %p120 = por %p118, %p119
      %p121 = scmp.ne.s32.totalorder %s109, %s110
      %p122 = scmp.eq.s32.totalorder %s37, 1
      %p123 = por %p121, %p122
      %p125 = scmp.ne.s32.totalorder %s110, %s124
      %p126 = scmp.eq.s32.totalorder %s37, 0
      %p127 = por %p125, %p126
      %s129 = sadd.s32 %s128, 1
      %p132 = scmp.eq.s32.totalorder %s31, 1
      %p133 = scmp.ne.s32.totalorder %s128, %s130
      %p134 = scmp.eq.s32.totalorder %s31, 0
      %p135 = por %p133, %p134
      %p136 = scmp.ne.s32.totalorder %s128, %s130
      %p137 = scmp.eq.s32.totalorder %s36, 1
      %p138 = por %p136, %p137
      %p139 = scmp.ne.s32.totalorder %s130, %s131
      %p140 = scmp.eq.s32.totalorder %s36, 0
      %p141 = por %p139, %p140
      %p142 = scmp.ne.s32.totalorder %s130, %s131
      %p143 = scmp.eq.s32.totalorder %s37, 1
      %p144 = por %p142, %p143
      %p146 = scmp.ne.s32.totalorder %s131, %s145
      %p147 = scmp.eq.s32.totalorder %s37, 0
      %p148 = por %p146, %p147
      %s150 = sadd.s32 %s149, 1
      %p153 = scmp.eq.s32.totalorder %s31, 1
      %p154 = scmp.ne.s32.totalorder %s149, %s151
      %p155 = scmp.eq.s32.totalorder %s31, 0
      %p156 = por %p154, %p155
      %p157 = scmp.ne.s32.totalorder %s149, %s151
      %p158 = scmp.eq.s32.totalorder %s36, 1
      %p159 = por %p157, %p158
      %p160 = scmp.ne.s32.totalorder %s151, %s152
      %p161 = scmp.eq.s32.totalorder %s36, 0
      %p162 = por %p160, %p161
      %p163 = scmp.ne.s32.totalorder %s151, %s152
      %p164 = scmp.eq.s32.totalorder %s37, 1
      %p165 = por %p163, %p164
      %p167 = scmp.ne.s32.totalorder %s152, %s166
      %p168 = scmp.eq.s32.totalorder %s37, 0
      %p169 = por %p167, %p168
      %s171 = sadd.s32 %s170, 1
      %p174 = scmp.eq.s32.totalorder %s31, 1
      %p175 = scmp.ne.s32.totalorder %s170, %s172
      %p176 = scmp.eq.s32.totalorder %s31, 0
      %p177 = por %p175, %p176
      %p178 = scmp.ne.s32.totalorder %s170, %s172
      %p179 = scmp.eq.s32.totalorder %s36, 1
      %p180 = por %p178, %p179
      %p181 = scmp.ne.s32.totalorder %s172, %s173
      %p182 = scmp.eq.s32.totalorder %s36, 0
      %p183 = por %p181, %p182
      %p184 = scmp.ne.s32.totalorder %s172, %s173
      %p185 = scmp.eq.s32.totalorder %s37, 1
      %p186 = por %p184, %p185
      %p188 = scmp.ne.s32.totalorder %s173, %s187
      %p189 = scmp.eq.s32.totalorder %s37, 0
      %p190 = por %p188, %p189
      %s192 = sadd.s32 %s191, 1
      %p195 = scmp.eq.s32.totalorder %s31, 1
      %p196 = scmp.ne.s32.totalorder %s191, %s193
      %p197 = scmp.eq.s32.totalorder %s31, 0
      %p198 = por %p196, %p197
      %p199 = scmp.ne.s32.totalorder %s191, %s193
      %p200 = scmp.eq.s32.totalorder %s36, 1
      %p201 = por %p199, %p200
      %p202 = scmp.ne.s32.totalorder %s193, %s194
      %p203 = scmp.eq.s32.totalorder %s36, 0
      %p204 = por %p202, %p203
      %p205 = scmp.ne.s32.totalorder %s193, %s194
      %p206 = scmp.eq.s32.totalorder %s37, 1
      %p207 = por %p205, %p206
      %p209 = scmp.ne.s32.totalorder %s194, %s208
      %p210 = scmp.eq.s32.totalorder %s37, 0
      %p211 = por %p209, %p210
      %s213 = sadd.s32 %s212, 1
      %p216 = scmp.eq.s32.totalorder %s31, 1
      %p217 = scmp.ne.s32.totalorder %s212, %s214
      %p218 = scmp.eq.s32.totalorder %s31, 0
      %p219 = por %p217, %p218
      %p220 = scmp.ne.s32.totalorder %s212, %s214
      %p221 = scmp.eq.s32.totalorder %s36, 1
      %p222 = por %p220, %p221
      %p223 = scmp.ne.s32.totalorder %s214, %s215
      %p224 = scmp.eq.s32.totalorder %s36, 0
      %p225 = por %p223, %p224
      %p226 = scmp.ne.s32.totalorder %s214, %s215
      %p227 = scmp.eq.s32.totalorder %s37, 1
      %p228 = por %p226, %p227
      %p230 = scmp.ne.s32.totalorder %s215, %s229
      %p231 = scmp.eq.s32.totalorder %s37, 0
      %p232 = por %p230, %p231
      %s234 = sadd.s32 %s233, 1
      %p237 = scmp.eq.s32.totalorder %s31, 1
      %p238 = scmp.ne.s32.totalorder %s233, %s235
      %p239 = scmp.eq.s32.totalorder %s31, 0
      %p240 = por %p238, %p239
      %p241 = scmp.ne.s32.totalorder %s233, %s235
      %p242 = scmp.eq.s32.totalorder %s36, 1
      %p243 = por %p241, %p242
      %p244 = scmp.ne.s32.totalorder %s235, %s236
      %p245 = scmp.eq.s32.totalorder %s36, 0
      %p246 = por %p244, %p245
      %p247 = scmp.ne.s32.totalorder %s235, %s236
      %p248 = scmp.eq.s32.totalorder %s37, 1
      %p249 = por %p247, %p248
      %p251 = scmp.ne.s32.totalorder %s236, %s250
      %p252 = scmp.eq.s32.totalorder %s37, 0
      %p253 = por %p251, %p252
      %s255 = sadd.s32 %s254, 1
      %p258 = scmp.eq.s32.totalorder %s31, 1
      %p259 = scmp.ne.s32.totalorder %s254, %s256
      %p260 = scmp.eq.s32.totalorder %s31, 0
      %p261 = por %p259, %p260
      %p262 = scmp.ne.s32.totalorder %s254, %s256
      %p263 = scmp.eq.s32.totalorder %s36, 1
      %p264 = por %p262, %p263
      %p265 = scmp.ne.s32.totalorder %s256, %s257
      %p266 = scmp.eq.s32.totalorder %s36, 0
      %p267 = por %p265, %p266
      %p268 = scmp.ne.s32.totalorder %s256, %s257
      %p269 = scmp.eq.s32.totalorder %s37, 1
      %p270 = por %p268, %p269
      %p272 = scmp.ne.s32.totalorder %s257, %s271
      %p273 = scmp.eq.s32.totalorder %s37, 0
      %p274 = por %p272, %p273
      %s276 = sadd.s32 %s275, 1
      %p279 = scmp.eq.s32.totalorder %s31, 1
      %p280 = scmp.ne.s32.totalorder %s275, %s277
      %p281 = scmp.eq.s32.totalorder %s31, 0
      %p282 = por %p280, %p281
      %p283 = scmp.ne.s32.totalorder %s275, %s277
      %p284 = scmp.eq.s32.totalorder %s36, 1
      %p285 = por %p283, %p284
      %p286 = scmp.ne.s32.totalorder %s277, %s278
      %p287 = scmp.eq.s32.totalorder %s36, 0
      %p288 = por %p286, %p287
      %p289 = scmp.ne.s32.totalorder %s277, %s278
      %p290 = scmp.eq.s32.totalorder %s37, 1
      %p291 = por %p289, %p290
      %p293 = scmp.ne.s32.totalorder %s278, %s292
      %p294 = scmp.eq.s32.totalorder %s37, 0
      %p295 = por %p293, %p294
      %s297 = sadd.s32 %s296, 1
      %p300 = scmp.eq.s32.totalorder %s31, 1
      %p301 = scmp.ne.s32.totalorder %s296, %s298
      %p302 = scmp.eq.s32.totalorder %s31, 0
      %p303 = por %p301, %p302
      %p304 = scmp.ne.s32.totalorder %s296, %s298
      %p305 = scmp.eq.s32.totalorder %s36, 1
      %p306 = por %p304, %p305
      %p307 = scmp.ne.s32.totalorder %s298, %s299
      %p308 = scmp.eq.s32.totalorder %s36, 0
      %p309 = por %p307, %p308
      %p310 = scmp.ne.s32.totalorder %s298, %s299
      %p311 = scmp.eq.s32.totalorder %s37, 1
      %p312 = por %p310, %p311
      %p314 = scmp.ne.s32.totalorder %s299, %s313
      %p315 = scmp.eq.s32.totalorder %s37, 0
      %p316 = por %p314, %p315
      %s318 = sadd.s32 %s317, 1
      %p321 = scmp.eq.s32.totalorder %s31, 1
      %p322 = scmp.ne.s32.totalorder %s317, %s319
      %p323 = scmp.eq.s32.totalorder %s31, 0
      %p324 = por %p322, %p323
      %p325 = scmp.ne.s32.totalorder %s317, %s319
      %p326 = scmp.eq.s32.totalorder %s36, 1
      %p327 = por %p325, %p326
      %p328 = scmp.ne.s32.totalorder %s319, %s320
      %p329 = scmp.eq.s32.totalorder %s36, 0
      %p330 = por %p328, %p329
      %p331 = scmp.ne.s32.totalorder %s319, %s320
      %p332 = scmp.eq.s32.totalorder %s37, 1
      %p333 = por %p331, %p332
      %p335 = scmp.ne.s32.totalorder %s320, %s334
      %p336 = scmp.eq.s32.totalorder %s37, 0
      %p337 = por %p335, %p336
      %s339 = sadd.s32 %s338, 1
      %p342 = scmp.eq.s32.totalorder %s31, 1
      %p343 = scmp.ne.s32.totalorder %s338, %s340
      %p344 = scmp.eq.s32.totalorder %s31, 0
      %p345 = por %p343, %p344
      %p346 = scmp.ne.s32.totalorder %s338, %s340
      %p347 = scmp.eq.s32.totalorder %s36, 1
      %p348 = por %p346, %p347
      %p349 = scmp.ne.s32.totalorder %s340, %s341
      %p350 = scmp.eq.s32.totalorder %s36, 0
      %p351 = por %p349, %p350
      %p352 = scmp.ne.s32.totalorder %s340, %s341
      %p353 = scmp.eq.s32.totalorder %s37, 1
      %p354 = por %p352, %p353
      %p356 = scmp.ne.s32.totalorder %s341, %s355
      %p357 = scmp.eq.s32.totalorder %s37, 0
      %p358 = por %p356, %p357
      %s359 = ssub.s32 %s31, %s38
      %p360 = scmp.eq.s32.totalorder %s359, 0
      %s362 = sadd.s32 %s361, 1
      %s363 = scalar_select %p360, %s361, %s362
      %p366 = pneg %p360
      %p367 = scmp.eq.s32.totalorder %s31, 1
      %p368 = por %p366, %p367
      %p369 = scmp.ne.s32.totalorder %s361, %s364
      %p370 = scmp.eq.s32.totalorder %s31, 0
      %p371 = por %p369, %p370
      %p372 = scmp.ne.s32.totalorder %s361, %s364
      %p373 = scmp.eq.s32.totalorder %s36, 1
      %p374 = por %p372, %p373
      %p375 = scmp.ne.s32.totalorder %s364, %s365
      %p376 = scmp.eq.s32.totalorder %s36, 0
      %p377 = por %p375, %p376
      %p378 = scmp.ne.s32.totalorder %s364, %s365
      %p379 = scmp.eq.s32.totalorder %s37, 1
      %p380 = por %p378, %p379
      %p382 = scmp.ne.s32.totalorder %s365, %s381
      %p383 = scmp.eq.s32.totalorder %s37, 0
      %p384 = por %p382, %p383
      %p385 = scmp.le.s32.totalorder 1, %s31
      %p386 = scmp.lt.s32.totalorder %s31, 3
      %p387 = pnand %p385, %p386
      %p388 = pneg %p387
      // Predicated region
      $region9: #{tpu_custom_call.1} parent=5 // pred_check
        _
      $region10: #{tpu_custom_call.1} parent=5 // pred_check_branch
        %390 = sbr.rel (%p387) target = $region12
      $region11: #{tpu_custom_call.1} parent=5 // pred_region
        %s391 = ssub.s32 %s31, 1
        // Predicated region
        $region13: #{tpu_custom_call.1} parent=11 // pred_check
          %p392 = pneg %p78
        $region14: #{tpu_custom_call.1} parent=11 // pred_check_branch
          %394 = sbr.rel (%p392) target = $region16
        $region15: #{tpu_custom_call.1} parent=11 // pred_region
          %s396 = ssub.s32 4096, 4096
          %397 = vsyncadd [#allocation6], %s396
          %s398 = sshll.u32 [#allocation5], 4
          %s399 = int_to_ptr.vmem [resolvable:$true] %s398
          %404 = dma.hbm_to_vmem [thread:$0]  %s1, 4096, %s399, [#allocation6], 256, 256, 16
        $region16: #{tpu_custom_call.1} parent=11 // pred_fallthru
          _
        // Predicated region
        $region17: #{tpu_custom_call.1} parent=11 // pred_check
          %p405 = pneg %p99
        $region18: #{tpu_custom_call.1} parent=11 // pred_check_branch
          %407 = sbr.rel (%p405) target = $region20
        $region19: #{tpu_custom_call.1} parent=11 // pred_region
          _
        $region20: #{tpu_custom_call.1} parent=11 // pred_fallthru
          _
        // Predicated region
        $region21: #{tpu_custom_call.1} parent=11 // pred_check
          %p408 = pneg %p120
        $region22: #{tpu_custom_call.1} parent=11 // pred_check_branch
          %410 = sbr.rel (%p408) target = $region24
        $region23: #{tpu_custom_call.1} parent=11 // pred_region
          %s412 = ssub.s32 8192, 8192
          %413 = vsyncadd [#allocation6], %s412
          %s414 = sshll.u32 [#allocation7], 4
          %s415 = int_to_ptr.vmem [resolvable:$true] %s414
          %420 = dma.hbm_to_vmem [thread:$0]  %s3, 8192, %s415, [#allocation6], 256, 256, 16
        $region24: #{tpu_custom_call.1} parent=11 // pred_fallthru
          _
        // Predicated region
        $region25: #{tpu_custom_call.1} parent=11 // pred_check
          %p421 = pneg %p141
        $region26: #{tpu_custom_call.1} parent=11 // pred_check_branch
          %423 = sbr.rel (%p421) target = $region28
        $region27: #{tpu_custom_call.1} parent=11 // pred_region
          _
        $region28: #{tpu_custom_call.1} parent=11 // pred_fallthru
          _
        // Predicated region
        $region29: #{tpu_custom_call.1} parent=11 // pred_check
          %p424 = pneg %p162
        $region30: #{tpu_custom_call.1} parent=11 // pred_check_branch
          %426 = sbr.rel (%p424) target = $region32
        $region31: #{tpu_custom_call.1} parent=11 // pred_region
          %s428 = ssub.s32 8192, 8192
          %429 = vsyncadd [#allocation9], %s428
          %s430 = sshll.u32 [#allocation8], 4
          %s431 = int_to_ptr.vmem [resolvable:$true] %s430
          %436 = dma.hbm_to_vmem [thread:$0]  %s5, 8192, %s431, [#allocation9], 256, 256, 16
        $region32: #{tpu_custom_call.1} parent=11 // pred_fallthru
          _
        // Predicated region
        $region33: #{tpu_custom_call.1} parent=11 // pred_check
          %p437 = pneg %p183
        $region34: #{tpu_custom_call.1} parent=11 // pred_check_branch
          %439 = sbr.rel (%p437) target = $region36
        $region35: #{tpu_custom_call.1} parent=11 // pred_region
          _
        $region36: #{tpu_custom_call.1} parent=11 // pred_fallthru
          _
        // Predicated region
        $region37: #{tpu_custom_call.1} parent=11 // pred_check
          %p440 = pneg %p204
        $region38: #{tpu_custom_call.1} parent=11 // pred_check_branch
          %442 = sbr.rel (%p440) target = $region40
        $region39: #{tpu_custom_call.1} parent=11 // pred_region
          %s444 = ssub.s32 8192, 8192
          %445 = vsyncadd [#allocation9], %s444
          %s446 = sshll.u32 [#allocation10], 4
          %s447 = int_to_ptr.vmem [resolvable:$true] %s446
          %452 = dma.hbm_to_vmem [thread:$0]  %s7, 8192, %s447, [#allocation9], 256, 256, 16
        $region40: #{tpu_custom_call.1} parent=11 // pred_fallthru
          _
        // Predicated region
        $region41: #{tpu_custom_call.1} parent=11 // pred_check
          %p453 = pneg %p225
        $region42: #{tpu_custom_call.1} parent=11 // pred_check_branch
          %455 = sbr.rel (%p453) target = $region44
        $region43: #{tpu_custom_call.1} parent=11 // pred_region
          _
        $region44: #{tpu_custom_call.1} parent=11 // pred_fallthru
          _
        // Predicated region
        $region45: #{tpu_custom_call.1} parent=11 // pred_check
          %p456 = pneg %p246
        $region46: #{tpu_custom_call.1} parent=11 // pred_check_branch
          %458 = sbr.rel (%p456) target = $region48
        $region47: #{tpu_custom_call.1} parent=11 // pred_region
          %s460 = ssub.s32 8192, 8192
          %461 = vsyncadd [#allocation12], %s460
          %s462 = sshll.u32 [#allocation11], 4
          %s463 = int_to_ptr.vmem [resolvable:$true] %s462
          %468 = dma.hbm_to_vmem [thread:$0]  %s9, 8192, %s463, [#allocation12], 256, 256, 16
        $region48: #{tpu_custom_call.1} parent=11 // pred_fallthru
          _
        // Predicated region
        $region49: #{tpu_custom_call.1} parent=11 // pred_check
          %p469 = pneg %p267
        $region50: #{tpu_custom_call.1} parent=11 // pred_check_branch
          %471 = sbr.rel (%p469) target = $region52
        $region51: #{tpu_custom_call.1} parent=11 // pred_region
          _
        $region52: #{tpu_custom_call.1} parent=11 // pred_fallthru
          _
        // Predicated region
        $region53: #{tpu_custom_call.1} parent=11 // pred_check
          %p472 = pneg %p288
        $region54: #{tpu_custom_call.1} parent=11 // pred_check_branch
          %474 = sbr.rel (%p472) target = $region56
        $region55: #{tpu_custom_call.1} parent=11 // pred_region
          %s476 = ssub.s32 8192, 8192
          %477 = vsyncadd [#allocation12], %s476
          %s478 = sshll.u32 [#allocation13], 4
          %s479 = int_to_ptr.vmem [resolvable:$true] %s478
          %484 = dma.hbm_to_vmem [thread:$0]  %s11, 8192, %s479, [#allocation12], 256, 256, 16
        $region56: #{tpu_custom_call.1} parent=11 // pred_fallthru
          _
        // Predicated region
        $region57: #{tpu_custom_call.1} parent=11 // pred_check
          %p485 = pneg %p309
        $region58: #{tpu_custom_call.1} parent=11 // pred_check_branch
          %487 = sbr.rel (%p485) target = $region60
        $region59: #{tpu_custom_call.1} parent=11 // pred_region
          _
        $region60: #{tpu_custom_call.1} parent=11 // pred_fallthru
          _
        // Predicated region
        $region61: #{tpu_custom_call.1} parent=11 // pred_check
          %p488 = pneg %p330
        $region62: #{tpu_custom_call.1} parent=11 // pred_check_branch
          %490 = sbr.rel (%p488) target = $region64
        $region63: #{tpu_custom_call.1} parent=11 // pred_region
          %s492 = ssub.s32 4096, 4096
          %493 = vsyncadd [#allocation15], %s492
          %s494 = sshll.u32 [#allocation14], 4
          %s495 = int_to_ptr.vmem [resolvable:$true] %s494
          %500 = dma.hbm_to_vmem [thread:$0]  %s13, 4096, %s495, [#allocation15], 128, 128, 8
        $region64: #{tpu_custom_call.1} parent=11 // pred_fallthru
          _
        // Predicated region
        $region65: #{tpu_custom_call.1} parent=11 // pred_check
          %p501 = pneg %p351
        $region66: #{tpu_custom_call.1} parent=11 // pred_check_branch
          %503 = sbr.rel (%p501) target = $region68
        $region67: #{tpu_custom_call.1} parent=11 // pred_region
          _
        $region68: #{tpu_custom_call.1} parent=11 // pred_fallthru
          _
      $region12: #{tpu_custom_call.1} parent=5 // pred_fallthru
        _
      %p504 = scmp.lt.s32.totalorder %s31, 2
      // Predicated region
      $region69: #{tpu_custom_call.1} parent=5 // pred_check
        %p505 = pneg %p504
      $region70: #{tpu_custom_call.1} parent=5 // pred_check_branch
        %507 = sbr.rel (%p505) target = $region72
      $region71: #{tpu_custom_call.1} parent=5 // pred_region
        // Predicated region
        $region73: #{tpu_custom_call.1} parent=71 // pred_check
          %p508 = pneg %p51
        $region74: #{tpu_custom_call.1} parent=71 // pred_check_branch
          %510 = sbr.rel (%p508) target = $region76
        $region75: #{tpu_custom_call.1} parent=71 // pred_region
          %s511 = sand.u32 %s41, 1
          %s512 = scalar_lea.sflag [#allocation3], %s511
          %s513 = sand.u32 %s41, 1
          %s514 = smul.addr %s513, 8
          %s515 = scalar_lea.vmem [#allocation2], %s514
          %s517 = ssub.s32 128, 128
          %518 = vsyncadd %s512, %s517
          %s519 = smul.addr %s31, 128
          %s520 = scalar_lea.hbm %s0, %s519
          %s522 = sshll.u32 %s515, 4
          %s523 = int_to_ptr.vmem [resolvable:$true] %s522
          %525 = dma.hbm_to_vmem [thread:$0]  %s520, 128, %s523, %s512
        $region76: #{tpu_custom_call.1} parent=71 // pred_fallthru
          _
      $region72: #{tpu_custom_call.1} parent=5 // pred_fallthru
        _
      %p526 = scmp.le.s32.totalorder 1, %s31
      %p527 = scmp.lt.s32.totalorder %s31, 3
      %p528 = pnand %p526, %p527
      %p529 = pneg %p528
      // Predicated region
      $region77: #{tpu_custom_call.1} parent=5 // pred_check
        _
      $region78: #{tpu_custom_call.1} parent=5 // pred_check_branch
        %531 = sbr.rel (%p528) target = $region80
      $region79: #{tpu_custom_call.1} parent=5 // pred_region
        %s532 = ssub.s32 %s31, 1
        %s533 = sand.u32 %s44, 1
        %s534 = scalar_lea.sflag [#allocation3], %s533
        %s535 = sand.u32 %s44, 1
        %s536 = smul.addr %s535, 8
        %s537 = scalar_lea.vmem [#allocation2], %s536
        // Predicated region
        $region81: #{tpu_custom_call.1} parent=79 // pred_check
          %p538 = pneg %p57
        $region82: #{tpu_custom_call.1} parent=79 // pred_check_branch
          %540 = sbr.rel (%p538) target = $region84
        $region83: #{tpu_custom_call.1} parent=79 // pred_region
          %541 = dma.done %s534, 128
        $region84: #{tpu_custom_call.1} parent=79 // pred_fallthru
          _
        // Predicated region
        $region85: #{tpu_custom_call.1} parent=79 // pred_check
          %p542 = pneg %p78
        $region86: #{tpu_custom_call.1} parent=79 // pred_check_branch
          %544 = sbr.rel (%p542) target = $region88
        $region87: #{tpu_custom_call.1} parent=79 // pred_region
          %545 = dma.done [#allocation6], 4096
        $region88: #{tpu_custom_call.1} parent=79 // pred_fallthru
          _
        // Predicated region
        $region89: #{tpu_custom_call.1} parent=79 // pred_check
          %p546 = pneg %p120
        $region90: #{tpu_custom_call.1} parent=79 // pred_check_branch
          %548 = sbr.rel (%p546) target = $region92
        $region91: #{tpu_custom_call.1} parent=79 // pred_region
          %549 = dma.done [#allocation6], 8192
        $region92: #{tpu_custom_call.1} parent=79 // pred_fallthru
          _
        // Predicated region
        $region93: #{tpu_custom_call.1} parent=79 // pred_check
          %p550 = pneg %p162
        $region94: #{tpu_custom_call.1} parent=79 // pred_check_branch
          %552 = sbr.rel (%p550) target = $region96
        $region95: #{tpu_custom_call.1} parent=79 // pred_region
          %553 = dma.done [#allocation9], 8192
        $region96: #{tpu_custom_call.1} parent=79 // pred_fallthru
          _
        // Predicated region
        $region97: #{tpu_custom_call.1} parent=79 // pred_check
          %p554 = pneg %p204
        $region98: #{tpu_custom_call.1} parent=79 // pred_check_branch
          %556 = sbr.rel (%p554) target = $region100
        $region99: #{tpu_custom_call.1} parent=79 // pred_region
          %557 = dma.done [#allocation9], 8192
        $region100: #{tpu_custom_call.1} parent=79 // pred_fallthru
          _
        // Predicated region
        $region101: #{tpu_custom_call.1} parent=79 // pred_check
          %p558 = pneg %p246
        $region102: #{tpu_custom_call.1} parent=79 // pred_check_branch
          %560 = sbr.rel (%p558) target = $region104
        $region103: #{tpu_custom_call.1} parent=79 // pred_region
          %561 = dma.done [#allocation12], 8192
        $region104: #{tpu_custom_call.1} parent=79 // pred_fallthru
          _
        // Predicated region
        $region105: #{tpu_custom_call.1} parent=79 // pred_check
          %p562 = pneg %p288
        $region106: #{tpu_custom_call.1} parent=79 // pred_check_branch
          %564 = sbr.rel (%p562) target = $region108
        $region107: #{tpu_custom_call.1} parent=79 // pred_region
          %565 = dma.done [#allocation12], 8192
        $region108: #{tpu_custom_call.1} parent=79 // pred_fallthru
          _
        // Predicated region
        $region109: #{tpu_custom_call.1} parent=79 // pred_check
          %p566 = pneg %p330
        $region110: #{tpu_custom_call.1} parent=79 // pred_check_branch
          %568 = sbr.rel (%p566) target = $region112
        $region111: #{tpu_custom_call.1} parent=79 // pred_region
          %569 = dma.done [#allocation15], 4096
        $region112: #{tpu_custom_call.1} parent=79 // pred_fallthru
          _
        %s570 = sand.u32 %s44, 1
        %s571 = scalar_lea.sflag [#allocation3], %s570
        %s572 = sand.u32 %s44, 1
        %s573 = smul.addr %s572, 8
        %s574 = scalar_lea.vmem [#allocation2], %s573
        %p575 = pneg %p57
        %p576 = pneg %p54
        %p577 = pneg %p78
        %p578 = pneg %p75
        %p579 = pneg %p99
        %p580 = pneg %p96
        %p581 = pneg %p120
        %p582 = pneg %p117
        %p583 = pneg %p141
        %p584 = pneg %p138
        %p585 = pneg %p162
        %p586 = pneg %p159
        %p587 = pneg %p183
        %p588 = pneg %p180
        %p589 = pneg %p204
        %p590 = pneg %p201
        %p591 = pneg %p225
        %p592 = pneg %p222
        %p593 = pneg %p246
        %p594 = pneg %p243
        %p595 = pneg %p267
        %p596 = pneg %p264
        %p597 = pneg %p288
        %p598 = pneg %p285
        %p599 = pneg %p309
        %p600 = pneg %p306
        %p601 = pneg %p330
        %p602 = pneg %p327
        %p603 = pneg %p351
        %p604 = pneg %p348
        %p605 = pneg %p377
        %p606 = pneg %p374
        %s607 = sand.u32 %s364, 1
        %s608 = scalar_lea.sflag [#allocation4], %s607
        %s609 = sand.u32 %s364, 1
        %s610 = smul.addr %s609, 8
        %s611 = scalar_lea.vmem [#allocation16], %s610
        %v612 = vld [vmem:[%s537] sm:$0xff]
        %v613 = vld [vmem:[#allocation5] sm:$0xff]
        %v614 = vld [vmem:[#allocation5 + $0x8] sm:$0xff]
        %v615 = vld [vmem:[#allocation5 + $0x10] sm:$0xff]
        %v616 = vld [vmem:[#allocation5 + $0x18] sm:$0xff]
        %v617 = vld [vmem:[#allocation5 + $0x20] sm:$0xff]
        %v618 = vld [vmem:[#allocation5 + $0x28] sm:$0xff]
        %v619 = vld [vmem:[#allocation5 + $0x30] sm:$0xff]
        %v620 = vld [vmem:[#allocation5 + $0x38] sm:$0xff]
        %v621 = vld [vmem:[#allocation5 + $0x40] sm:$0xff]
        %v622 = vld [vmem:[#allocation5 + $0x48] sm:$0xff]
        %v623 = vld [vmem:[#allocation5 + $0x50] sm:$0xff]
        %v624 = vld [vmem:[#allocation5 + $0x58] sm:$0xff]
        %v625 = vld [vmem:[#allocation5 + $0x60] sm:$0xff]
        %v626 = vld [vmem:[#allocation5 + $0x68] sm:$0xff]
        %v627 = vld [vmem:[#allocation5 + $0x70] sm:$0xff]
        %v628 = vld [vmem:[#allocation5 + $0x78] sm:$0xff]
        %v629 = vld [vmem:[#allocation5 + $0x80] sm:$0xff]
        %v630 = vld [vmem:[#allocation5 + $0x88] sm:$0xff]
        %v631 = vld [vmem:[#allocation5 + $0x90] sm:$0xff]
        %v632 = vld [vmem:[#allocation5 + $0x98] sm:$0xff]
        %v633 = vld [vmem:[#allocation5 + $0xa0] sm:$0xff]
        %v634 = vld [vmem:[#allocation5 + $0xa8] sm:$0xff]
        %v635 = vld [vmem:[#allocation5 + $0xb0] sm:$0xff]
        %v636 = vld [vmem:[#allocation5 + $0xb8] sm:$0xff]
        %v637 = vld [vmem:[#allocation5 + $0xc0] sm:$0xff]
        %v638 = vld [vmem:[#allocation5 + $0xc8] sm:$0xff]
        %v639 = vld [vmem:[#allocation5 + $0xd0] sm:$0xff]
        %v640 = vld [vmem:[#allocation5 + $0xd8] sm:$0xff]
        %v641 = vld [vmem:[#allocation5 + $0xe0] sm:$0xff]
        %v642 = vld [vmem:[#allocation5 + $0xe8] sm:$0xff]
        %v643 = vld [vmem:[#allocation5 + $0xf0] sm:$0xff]
        %v644 = vld [vmem:[#allocation5 + $0xf8] sm:$0xff]
        %v645 = vld [vmem:[%s2] sm:$0x3]
        %v647 = vlaneseq
        %v648 = vshrl.u32 %v647, 7
        %v649 = vsub.s32 0, %v648
        %v650 = vrot.slane %v645, %v649
        %v651 = vlaneseq
        %v652 = vshrl.u32 %v651, 7
        %v653 = vsub.s32 1, %v652
        %v654 = vrot.slane %v645, %v653
        %657 = vmatprep.subr.mxu0 %v644
        %658 = vmatpush1.msra.mxu0 %v643
        %659 = vmatprep.subr.mxu0 %v642
        %660 = vmatpush1.msra.mxu0 %v641
        %661 = vmatprep.subr.mxu0 %v640
        %662 = vmatpush1.msra.mxu0 %v639
        %663 = vmatprep.subr.mxu0 %v638
        %664 = vmatpush1.msra.mxu0 %v637
        %665 = vmatprep.subr.mxu0 %v636
        %666 = vmatpush1.msra.mxu0 %v635
        %667 = vmatprep.subr.mxu0 %v634
        %668 = vmatpush1.msra.mxu0 %v633
        %669 = vmatprep.subr.mxu0 %v632
        %670 = vmatpush1.msra.mxu0 %v631
        %671 = vmatprep.subr.mxu0 %v630
        %672 = vmatpush1.msra.mxu0 %v629
        %673 = vmatprep.subr.mxu0 %v628
        %674 = vmatpush1.msra.mxu0 %v627
        %675 = vmatprep.subr.mxu0 %v626
        %676 = vmatpush1.msra.mxu0 %v625
        %677 = vmatprep.subr.mxu0 %v624
        %678 = vmatpush1.msra.mxu0 %v623
        %679 = vmatprep.subr.mxu0 %v622
        %680 = vmatpush1.msra.mxu0 %v621
        %681 = vmatprep.subr.mxu0 %v620
        %682 = vmatpush1.msra.mxu0 %v619
        %683 = vmatprep.subr.mxu0 %v618
        %684 = vmatpush1.msra.mxu0 %v617
        %685 = vmatprep.subr.mxu0 %v616
        %686 = vmatpush1.msra.mxu0 %v615
        %687 = vmatprep.subr.mxu0 %v614
        %688 = vmatpush1.msra.mxu0 %v613
        %689 = vmatprep.subr.mxu0 0.0
        %690 = vmatpush2.msra.mxu0 0.0
        %691 = vmatprep.subr.mxu0 0.0
        %692 = vmatpush2.msra.mxu0 0.0
        %693 = vmatprep.subr.mxu0 0.0
        %694 = vmatpush2.msra.mxu0 0.0
        %695 = vmatprep.subr.mxu0 0.0
        %696 = vmatpush2.msra.mxu0 0.0
        %697 = vmatprep.subr.mxu0 0.0
        %698 = vmatpush2.msra.mxu0 0.0
        %699 = vmatprep.subr.mxu0 0.0
        %700 = vmatpush2.msra.mxu0 0.0
        %701 = vmatprep.subr.mxu0 0.0
        %702 = vmatpush2.msra.mxu0 0.0
        %703 = vmatprep.subr.mxu0 0.0
        %704 = vmatpush2.msra.mxu0 0.0
        %705 = vmatprep.subr.mxu0 0.0
        %706 = vmatpush2.msra.mxu0 0.0
        %707 = vmatprep.subr.mxu0 0.0
        %708 = vmatpush2.msra.mxu0 0.0
        %709 = vmatprep.subr.mxu0 0.0
        %710 = vmatpush2.msra.mxu0 0.0
        %711 = vmatprep.subr.mxu0 0.0
        %712 = vmatpush2.msra.mxu0 0.0
        %713 = vmatprep.subr.mxu0 0.0
        %714 = vmatpush2.msra.mxu0 0.0
        %715 = vmatprep.subr.mxu0 0.0
        %716 = vmatpush2.msra.mxu0 0.0
        %717 = vmatprep.subr.mxu0 0.0
        %718 = vmatpush2.msra.mxu0 0.0
        %719 = vmatprep.subr.mxu0 0.0
        %720 = vmatpush2.msra.mxu0 0.0
        %721 = vmatprep.mubr.f32.mxu0 0.0
        %722 = vmatmul.mubr.f32.gmra.mxu0 %v612
        %v723 = vpop.f32.mrf.mxu0
        %v724 = vadd.f32 %v650, %v723
        %v725 = vpop.f32.mrf.mxu0
        %v726 = vadd.f32 %v654, %v725
        %727 = vdwg.mxu0
        %v728 = vmul.f32 %v724, 0.01
        %v729 = vmul.f32 %v726, 0.01
        %v730 = vmax.f32 %v724, %v728
        %v731 = vmax.f32 %v726, %v729
        %v732 = vld [vmem:[#allocation7] sm:$0xff]
        %v733 = vld [vmem:[#allocation7 + $0x8] sm:$0xff]
        %v734 = vld [vmem:[#allocation7 + $0x10] sm:$0xff]
        %v735 = vld [vmem:[#allocation7 + $0x18] sm:$0xff]
        %v736 = vld [vmem:[#allocation7 + $0x20] sm:$0xff]
        %v737 = vld [vmem:[#allocation7 + $0x28] sm:$0xff]
        %v738 = vld [vmem:[#allocation7 + $0x30] sm:$0xff]
        %v739 = vld [vmem:[#allocation7 + $0x38] sm:$0xff]
        %v740 = vld [vmem:[#allocation7 + $0x40] sm:$0xff]
        %v741 = vld [vmem:[#allocation7 + $0x48] sm:$0xff]
        %v742 = vld [vmem:[#allocation7 + $0x50] sm:$0xff]
        %v743 = vld [vmem:[#allocation7 + $0x58] sm:$0xff]
        %v744 = vld [vmem:[#allocation7 + $0x60] sm:$0xff]
        %v745 = vld [vmem:[#allocation7 + $0x68] sm:$0xff]
        %v746 = vld [vmem:[#allocation7 + $0x70] sm:$0xff]
        %v747 = vld [vmem:[#allocation7 + $0x78] sm:$0xff]
        %v748 = vld [vmem:[#allocation7 + $0x80] sm:$0xff]
        %v749 = vld [vmem:[#allocation7 + $0x88] sm:$0xff]
        %v750 = vld [vmem:[#allocation7 + $0x90] sm:$0xff]
        %v751 = vld [vmem:[#allocation7 + $0x98] sm:$0xff]
        %v752 = vld [vmem:[#allocation7 + $0xa0] sm:$0xff]
        %v753 = vld [vmem:[#allocation7 + $0xa8] sm:$0xff]
        %v754 = vld [vmem:[#allocation7 + $0xb0] sm:$0xff]
        %v755 = vld [vmem:[#allocation7 + $0xb8] sm:$0xff]
        %v756 = vld [vmem:[#allocation7 + $0xc0] sm:$0xff]
        %v757 = vld [vmem:[#allocation7 + $0xc8] sm:$0xff]
        %v758 = vld [vmem:[#allocation7 + $0xd0] sm:$0xff]
        %v759 = vld [vmem:[#allocation7 + $0xd8] sm:$0xff]
        %v760 = vld [vmem:[#allocation7 + $0xe0] sm:$0xff]
        %v761 = vld [vmem:[#allocation7 + $0xe8] sm:$0xff]
        %v762 = vld [vmem:[#allocation7 + $0xf0] sm:$0xff]
        %v763 = vld [vmem:[#allocation7 + $0xf8] sm:$0xff]
        %v764 = vld [vmem:[#allocation7 + $0x100] sm:$0xff]
        %v765 = vld [vmem:[#allocation7 + $0x108] sm:$0xff]
        %v766 = vld [vmem:[#allocation7 + $0x110] sm:$0xff]
        %v767 = vld [vmem:[#allocation7 + $0x118] sm:$0xff]
        %v768 = vld [vmem:[#allocation7 + $0x120] sm:$0xff]
        %v769 = vld [vmem:[#allocation7 + $0x128] sm:$0xff]
        %v770 = vld [vmem:[#allocation7 + $0x130] sm:$0xff]
        %v771 = vld [vmem:[#allocation7 + $0x138] sm:$0xff]
        %v772 = vld [vmem:[#allocation7 + $0x140] sm:$0xff]
        %v773 = vld [vmem:[#allocation7 + $0x148] sm:$0xff]
        %v774 = vld [vmem:[#allocation7 + $0x150] sm:$0xff]
        %v775 = vld [vmem:[#allocation7 + $0x158] sm:$0xff]
        %v776 = vld [vmem:[#allocation7 + $0x160] sm:$0xff]
        %v777 = vld [vmem:[#allocation7 + $0x168] sm:$0xff]
        %v778 = vld [vmem:[#allocation7 + $0x170] sm:$0xff]
        %v779 = vld [vmem:[#allocation7 + $0x178] sm:$0xff]
        %v780 = vld [vmem:[#allocation7 + $0x180] sm:$0xff]
        %v781 = vld [vmem:[#allocation7 + $0x188] sm:$0xff]
        %v782 = vld [vmem:[#allocation7 + $0x190] sm:$0xff]
        %v783 = vld [vmem:[#allocation7 + $0x198] sm:$0xff]
        %v784 = vld [vmem:[#allocation7 + $0x1a0] sm:$0xff]
        %v785 = vld [vmem:[#allocation7 + $0x1a8] sm:$0xff]
        %v786 = vld [vmem:[#allocation7 + $0x1b0] sm:$0xff]
        %v787 = vld [vmem:[#allocation7 + $0x1b8] sm:$0xff]
        %v788 = vld [vmem:[#allocation7 + $0x1c0] sm:$0xff]
        %v789 = vld [vmem:[#allocation7 + $0x1c8] sm:$0xff]
        %v790 = vld [vmem:[#allocation7 + $0x1d0] sm:$0xff]
        %v791 = vld [vmem:[#allocation7 + $0x1d8] sm:$0xff]
        %v792 = vld [vmem:[#allocation7 + $0x1e0] sm:$0xff]
        %v793 = vld [vmem:[#allocation7 + $0x1e8] sm:$0xff]
        %v794 = vld [vmem:[#allocation7 + $0x1f0] sm:$0xff]
        %v795 = vld [vmem:[#allocation7 + $0x1f8] sm:$0xff]
        %v796 = vld [vmem:[%s4] sm:$0x3]
        %v798 = vlaneseq
        %v799 = vshrl.u32 %v798, 7
        %v800 = vsub.s32 0, %v799
        %v801 = vrot.slane %v796, %v800
        %v802 = vlaneseq
        %v803 = vshrl.u32 %v802, 7
        %v804 = vsub.s32 1, %v803
        %v805 = vrot.slane %v796, %v804
        %808 = vmatprep.subr.mxu0 %v763
        %809 = vmatpush1.msra.mxu0 %v762
        %810 = vmatprep.subr.mxu0 %v761
        %811 = vmatpush1.msra.mxu0 %v760
        %812 = vmatprep.subr.mxu0 %v759
        %813 = vmatpush1.msra.mxu0 %v758
        %814 = vmatprep.subr.mxu0 %v757
        %815 = vmatpush1.msra.mxu0 %v756
        %816 = vmatprep.subr.mxu0 %v755
        %817 = vmatpush1.msra.mxu0 %v754
        %818 = vmatprep.subr.mxu0 %v753
        %819 = vmatpush1.msra.mxu0 %v752
        %820 = vmatprep.subr.mxu0 %v751
        %821 = vmatpush1.msra.mxu0 %v750
        %822 = vmatprep.subr.mxu0 %v749
        %823 = vmatpush1.msra.mxu0 %v748
        %824 = vmatprep.subr.mxu0 %v747
        %825 = vmatpush1.msra.mxu0 %v746
        %826 = vmatprep.subr.mxu0 %v745
        %827 = vmatpush1.msra.mxu0 %v744
        %828 = vmatprep.subr.mxu0 %v743
        %829 = vmatpush1.msra.mxu0 %v742
        %830 = vmatprep.subr.mxu0 %v741
        %831 = vmatpush1.msra.mxu0 %v740
        %832 = vmatprep.subr.mxu0 %v739
        %833 = vmatpush1.msra.mxu0 %v738
        %834 = vmatprep.subr.mxu0 %v737
        %835 = vmatpush1.msra.mxu0 %v736
        %836 = vmatprep.subr.mxu0 %v735
        %837 = vmatpush1.msra.mxu0 %v734
        %838 = vmatprep.subr.mxu0 %v733
        %839 = vmatpush1.msra.mxu0 %v732
        %840 = vmatprep.subr.mxu0 %v795
        %841 = vmatpush2.msra.mxu0 %v794
        %842 = vmatprep.subr.mxu0 %v793
        %843 = vmatpush2.msra.mxu0 %v792
        %844 = vmatprep.subr.mxu0 %v791
        %845 = vmatpush2.msra.mxu0 %v790
        %846 = vmatprep.subr.mxu0 %v789
        %847 = vmatpush2.msra.mxu0 %v788
        %848 = vmatprep.subr.mxu0 %v787
        %849 = vmatpush2.msra.mxu0 %v786
        %850 = vmatprep.subr.mxu0 %v785
        %851 = vmatpush2.msra.mxu0 %v784
        %852 = vmatprep.subr.mxu0 %v783
        %853 = vmatpush2.msra.mxu0 %v782
        %854 = vmatprep.subr.mxu0 %v781
        %855 = vmatpush2.msra.mxu0 %v780
        %856 = vmatprep.subr.mxu0 %v779
        %857 = vmatpush2.msra.mxu0 %v778
        %858 = vmatprep.subr.mxu0 %v777
        %859 = vmatpush2.msra.mxu0 %v776
        %860 = vmatprep.subr.mxu0 %v775
        %861 = vmatpush2.msra.mxu0 %v774
        %862 = vmatprep.subr.mxu0 %v773
        %863 = vmatpush2.msra.mxu0 %v772
        %864 = vmatprep.subr.mxu0 %v771
        %865 = vmatpush2.msra.mxu0 %v770
        %866 = vmatprep.subr.mxu0 %v769
        %867 = vmatpush2.msra.mxu0 %v768
        %868 = vmatprep.subr.mxu0 %v767
        %869 = vmatpush2.msra.mxu0 %v766
        %870 = vmatprep.subr.mxu0 %v765
        %871 = vmatpush2.msra.mxu0 %v764
        %872 = vmatprep.mubr.f32.mxu0 %v731
        %873 = vmatmul.mubr.f32.gmra.mxu0 %v730
        %v874 = vpop.f32.mrf.mxu0
        %v875 = vadd.f32 %v801, %v874
        %v876 = vpop.f32.mrf.mxu0
        %v877 = vadd.f32 %v805, %v876
        %878 = vdwg.mxu0
        %v879 = vmul.f32 %v875, 0.01
        %v880 = vmul.f32 %v877, 0.01
        %v881 = vmax.f32 %v875, %v879
        %v882 = vmax.f32 %v877, %v880
        %v883 = vld [vmem:[#allocation8] sm:$0xff]
        %v884 = vld [vmem:[#allocation8 + $0x8] sm:$0xff]
        %v885 = vld [vmem:[#allocation8 + $0x10] sm:$0xff]
        %v886 = vld [vmem:[#allocation8 + $0x18] sm:$0xff]
        %v887 = vld [vmem:[#allocation8 + $0x20] sm:$0xff]
        %v888 = vld [vmem:[#allocation8 + $0x28] sm:$0xff]
        %v889 = vld [vmem:[#allocation8 + $0x30] sm:$0xff]
        %v890 = vld [vmem:[#allocation8 + $0x38] sm:$0xff]
        %v891 = vld [vmem:[#allocation8 + $0x40] sm:$0xff]
        %v892 = vld [vmem:[#allocation8 + $0x48] sm:$0xff]
        %v893 = vld [vmem:[#allocation8 + $0x50] sm:$0xff]
        %v894 = vld [vmem:[#allocation8 + $0x58] sm:$0xff]
        %v895 = vld [vmem:[#allocation8 + $0x60] sm:$0xff]
        %v896 = vld [vmem:[#allocation8 + $0x68] sm:$0xff]
        %v897 = vld [vmem:[#allocation8 + $0x70] sm:$0xff]
        %v898 = vld [vmem:[#allocation8 + $0x78] sm:$0xff]
        %v899 = vld [vmem:[#allocation8 + $0x80] sm:$0xff]
        %v900 = vld [vmem:[#allocation8 + $0x88] sm:$0xff]
        %v901 = vld [vmem:[#allocation8 + $0x90] sm:$0xff]
        %v902 = vld [vmem:[#allocation8 + $0x98] sm:$0xff]
        %v903 = vld [vmem:[#allocation8 + $0xa0] sm:$0xff]
        %v904 = vld [vmem:[#allocation8 + $0xa8] sm:$0xff]
        %v905 = vld [vmem:[#allocation8 + $0xb0] sm:$0xff]
        %v906 = vld [vmem:[#allocation8 + $0xb8] sm:$0xff]
        %v907 = vld [vmem:[#allocation8 + $0xc0] sm:$0xff]
        %v908 = vld [vmem:[#allocation8 + $0xc8] sm:$0xff]
        %v909 = vld [vmem:[#allocation8 + $0xd0] sm:$0xff]
        %v910 = vld [vmem:[#allocation8 + $0xd8] sm:$0xff]
        %v911 = vld [vmem:[#allocation8 + $0xe0] sm:$0xff]
        %v912 = vld [vmem:[#allocation8 + $0xe8] sm:$0xff]
        %v913 = vld [vmem:[#allocation8 + $0xf0] sm:$0xff]
        %v914 = vld [vmem:[#allocation8 + $0xf8] sm:$0xff]
        %v915 = vld [vmem:[#allocation8 + $0x100] sm:$0xff]
        %v916 = vld [vmem:[#allocation8 + $0x108] sm:$0xff]
        %v917 = vld [vmem:[#allocation8 + $0x110] sm:$0xff]
        %v918 = vld [vmem:[#allocation8 + $0x118] sm:$0xff]
        %v919 = vld [vmem:[#allocation8 + $0x120] sm:$0xff]
        %v920 = vld [vmem:[#allocation8 + $0x128] sm:$0xff]
        %v921 = vld [vmem:[#allocation8 + $0x130] sm:$0xff]
        %v922 = vld [vmem:[#allocation8 + $0x138] sm:$0xff]
        %v923 = vld [vmem:[#allocation8 + $0x140] sm:$0xff]
        %v924 = vld [vmem:[#allocation8 + $0x148] sm:$0xff]
        %v925 = vld [vmem:[#allocation8 + $0x150] sm:$0xff]
        %v926 = vld [vmem:[#allocation8 + $0x158] sm:$0xff]
        %v927 = vld [vmem:[#allocation8 + $0x160] sm:$0xff]
        %v928 = vld [vmem:[#allocation8 + $0x168] sm:$0xff]
        %v929 = vld [vmem:[#allocation8 + $0x170] sm:$0xff]
        %v930 = vld [vmem:[#allocation8 + $0x178] sm:$0xff]
        %v931 = vld [vmem:[#allocation8 + $0x180] sm:$0xff]
        %v932 = vld [vmem:[#allocation8 + $0x188] sm:$0xff]
        %v933 = vld [vmem:[#allocation8 + $0x190] sm:$0xff]
        %v934 = vld [vmem:[#allocation8 + $0x198] sm:$0xff]
        %v935 = vld [vmem:[#allocation8 + $0x1a0] sm:$0xff]
        %v936 = vld [vmem:[#allocation8 + $0x1a8] sm:$0xff]
        %v937 = vld [vmem:[#allocation8 + $0x1b0] sm:$0xff]
        %v938 = vld [vmem:[#allocation8 + $0x1b8] sm:$0xff]
        %v939 = vld [vmem:[#allocation8 + $0x1c0] sm:$0xff]
        %v940 = vld [vmem:[#allocation8 + $0x1c8] sm:$0xff]
        %v941 = vld [vmem:[#allocation8 + $0x1d0] sm:$0xff]
        %v942 = vld [vmem:[#allocation8 + $0x1d8] sm:$0xff]
        %v943 = vld [vmem:[#allocation8 + $0x1e0] sm:$0xff]
        %v944 = vld [vmem:[#allocation8 + $0x1e8] sm:$0xff]
        %v945 = vld [vmem:[#allocation8 + $0x1f0] sm:$0xff]
        %v946 = vld [vmem:[#allocation8 + $0x1f8] sm:$0xff]
        %v947 = vld [vmem:[%s6] sm:$0x3]
        %v949 = vlaneseq
        %v950 = vshrl.u32 %v949, 7
        %v951 = vsub.s32 0, %v950
        %v952 = vrot.slane %v947, %v951
        %v953 = vlaneseq
        %v954 = vshrl.u32 %v953, 7
        %v955 = vsub.s32 1, %v954
        %v956 = vrot.slane %v947, %v955
        %959 = vmatprep.subr.mxu0 %v914
        %960 = vmatpush1.msra.mxu0 %v913
        %961 = vmatprep.subr.mxu0 %v912
        %962 = vmatpush1.msra.mxu0 %v911
        %963 = vmatprep.subr.mxu0 %v910
        %964 = vmatpush1.msra.mxu0 %v909
        %965 = vmatprep.subr.mxu0 %v908
        %966 = vmatpush1.msra.mxu0 %v907
        %967 = vmatprep.subr.mxu0 %v906
        %968 = vmatpush1.msra.mxu0 %v905
        %969 = vmatprep.subr.mxu0 %v904
        %970 = vmatpush1.msra.mxu0 %v903
        %971 = vmatprep.subr.mxu0 %v902
        %972 = vmatpush1.msra.mxu0 %v901
        %973 = vmatprep.subr.mxu0 %v900
        %974 = vmatpush1.msra.mxu0 %v899
        %975 = vmatprep.subr.mxu0 %v898
        %976 = vmatpush1.msra.mxu0 %v897
        %977 = vmatprep.subr.mxu0 %v896
        %978 = vmatpush1.msra.mxu0 %v895
        %979 = vmatprep.subr.mxu0 %v894
        %980 = vmatpush1.msra.mxu0 %v893
        %981 = vmatprep.subr.mxu0 %v892
        %982 = vmatpush1.msra.mxu0 %v891
        %983 = vmatprep.subr.mxu0 %v890
        %984 = vmatpush1.msra.mxu0 %v889
        %985 = vmatprep.subr.mxu0 %v888
        %986 = vmatpush1.msra.mxu0 %v887
        %987 = vmatprep.subr.mxu0 %v886
        %988 = vmatpush1.msra.mxu0 %v885
        %989 = vmatprep.subr.mxu0 %v884
        %990 = vmatpush1.msra.mxu0 %v883
        %991 = vmatprep.subr.mxu0 %v946
        %992 = vmatpush2.msra.mxu0 %v945
        %993 = vmatprep.subr.mxu0 %v944
        %994 = vmatpush2.msra.mxu0 %v943
        %995 = vmatprep.subr.mxu0 %v942
        %996 = vmatpush2.msra.mxu0 %v941
        %997 = vmatprep.subr.mxu0 %v940
        %998 = vmatpush2.msra.mxu0 %v939
        %999 = vmatprep.subr.mxu0 %v938
        %1000 = vmatpush2.msra.mxu0 %v937
        %1001 = vmatprep.subr.mxu0 %v936
        %1002 = vmatpush2.msra.mxu0 %v935
        %1003 = vmatprep.subr.mxu0 %v934
        %1004 = vmatpush2.msra.mxu0 %v933
        %1005 = vmatprep.subr.mxu0 %v932
        %1006 = vmatpush2.msra.mxu0 %v931
        %1007 = vmatprep.subr.mxu0 %v930
        %1008 = vmatpush2.msra.mxu0 %v929
        %1009 = vmatprep.subr.mxu0 %v928
        %1010 = vmatpush2.msra.mxu0 %v927
        %1011 = vmatprep.subr.mxu0 %v926
        %1012 = vmatpush2.msra.mxu0 %v925
        %1013 = vmatprep.subr.mxu0 %v924
        %1014 = vmatpush2.msra.mxu0 %v923
        %1015 = vmatprep.subr.mxu0 %v922
        %1016 = vmatpush2.msra.mxu0 %v921
        %1017 = vmatprep.subr.mxu0 %v920
        %1018 = vmatpush2.msra.mxu0 %v919
        %1019 = vmatprep.subr.mxu0 %v918
        %1020 = vmatpush2.msra.mxu0 %v917
        %1021 = vmatprep.subr.mxu0 %v916
        %1022 = vmatpush2.msra.mxu0 %v915
        %1023 = vmatprep.mubr.f32.mxu0 %v882
        %1024 = vmatmul.mubr.f32.gmra.mxu0 %v881
        %v1025 = vpop.f32.mrf.mxu0
        %v1026 = vadd.f32 %v952, %v1025
        %v1027 = vpop.f32.mrf.mxu0
        %v1028 = vadd.f32 %v956, %v1027
        %1029 = vdwg.mxu0
        %v1030 = vmul.f32 %v1026, 0.01
        %v1031 = vmul.f32 %v1028, 0.01
        %v1032 = vmax.f32 %v1026, %v1030
        %v1033 = vmax.f32 %v1028, %v1031
        %v1034 = vld [vmem:[#allocation10] sm:$0xff]
        %v1035 = vld [vmem:[#allocation10 + $0x8] sm:$0xff]
        %v1036 = vld [vmem:[#allocation10 + $0x10] sm:$0xff]
        %v1037 = vld [vmem:[#allocation10 + $0x18] sm:$0xff]
        %v1038 = vld [vmem:[#allocation10 + $0x20] sm:$0xff]
        %v1039 = vld [vmem:[#allocation10 + $0x28] sm:$0xff]
        %v1040 = vld [vmem:[#allocation10 + $0x30] sm:$0xff]
        %v1041 = vld [vmem:[#allocation10 + $0x38] sm:$0xff]
        %v1042 = vld [vmem:[#allocation10 + $0x40] sm:$0xff]
        %v1043 = vld [vmem:[#allocation10 + $0x48] sm:$0xff]
        %v1044 = vld [vmem:[#allocation10 + $0x50] sm:$0xff]
        %v1045 = vld [vmem:[#allocation10 + $0x58] sm:$0xff]
        %v1046 = vld [vmem:[#allocation10 + $0x60] sm:$0xff]
        %v1047 = vld [vmem:[#allocation10 + $0x68] sm:$0xff]
        %v1048 = vld [vmem:[#allocation10 + $0x70] sm:$0xff]
        %v1049 = vld [vmem:[#allocation10 + $0x78] sm:$0xff]
        %v1050 = vld [vmem:[#allocation10 + $0x80] sm:$0xff]
        %v1051 = vld [vmem:[#allocation10 + $0x88] sm:$0xff]
        %v1052 = vld [vmem:[#allocation10 + $0x90] sm:$0xff]
        %v1053 = vld [vmem:[#allocation10 + $0x98] sm:$0xff]
        %v1054 = vld [vmem:[#allocation10 + $0xa0] sm:$0xff]
        %v1055 = vld [vmem:[#allocation10 + $0xa8] sm:$0xff]
        %v1056 = vld [vmem:[#allocation10 + $0xb0] sm:$0xff]
        %v1057 = vld [vmem:[#allocation10 + $0xb8] sm:$0xff]
        %v1058 = vld [vmem:[#allocation10 + $0xc0] sm:$0xff]
        %v1059 = vld [vmem:[#allocation10 + $0xc8] sm:$0xff]
        %v1060 = vld [vmem:[#allocation10 + $0xd0] sm:$0xff]
        %v1061 = vld [vmem:[#allocation10 + $0xd8] sm:$0xff]
        %v1062 = vld [vmem:[#allocation10 + $0xe0] sm:$0xff]
        %v1063 = vld [vmem:[#allocation10 + $0xe8] sm:$0xff]
        %v1064 = vld [vmem:[#allocation10 + $0xf0] sm:$0xff]
        %v1065 = vld [vmem:[#allocation10 + $0xf8] sm:$0xff]
        %v1066 = vld [vmem:[#allocation10 + $0x100] sm:$0xff]
        %v1067 = vld [vmem:[#allocation10 + $0x108] sm:$0xff]
        %v1068 = vld [vmem:[#allocation10 + $0x110] sm:$0xff]
        %v1069 = vld [vmem:[#allocation10 + $0x118] sm:$0xff]
        %v1070 = vld [vmem:[#allocation10 + $0x120] sm:$0xff]
        %v1071 = vld [vmem:[#allocation10 + $0x128] sm:$0xff]
        %v1072 = vld [vmem:[#allocation10 + $0x130] sm:$0xff]
        %v1073 = vld [vmem:[#allocation10 + $0x138] sm:$0xff]
        %v1074 = vld [vmem:[#allocation10 + $0x140] sm:$0xff]
        %v1075 = vld [vmem:[#allocation10 + $0x148] sm:$0xff]
        %v1076 = vld [vmem:[#allocation10 + $0x150] sm:$0xff]
        %v1077 = vld [vmem:[#allocation10 + $0x158] sm:$0xff]
        %v1078 = vld [vmem:[#allocation10 + $0x160] sm:$0xff]
        %v1079 = vld [vmem:[#allocation10 + $0x168] sm:$0xff]
        %v1080 = vld [vmem:[#allocation10 + $0x170] sm:$0xff]
        %v1081 = vld [vmem:[#allocation10 + $0x178] sm:$0xff]
        %v1082 = vld [vmem:[#allocation10 + $0x180] sm:$0xff]
        %v1083 = vld [vmem:[#allocation10 + $0x188] sm:$0xff]
        %v1084 = vld [vmem:[#allocation10 + $0x190] sm:$0xff]
        %v1085 = vld [vmem:[#allocation10 + $0x198] sm:$0xff]
        %v1086 = vld [vmem:[#allocation10 + $0x1a0] sm:$0xff]
        %v1087 = vld [vmem:[#allocation10 + $0x1a8] sm:$0xff]
        %v1088 = vld [vmem:[#allocation10 + $0x1b0] sm:$0xff]
        %v1089 = vld [vmem:[#allocation10 + $0x1b8] sm:$0xff]
        %v1090 = vld [vmem:[#allocation10 + $0x1c0] sm:$0xff]
        %v1091 = vld [vmem:[#allocation10 + $0x1c8] sm:$0xff]
        %v1092 = vld [vmem:[#allocation10 + $0x1d0] sm:$0xff]
        %v1093 = vld [vmem:[#allocation10 + $0x1d8] sm:$0xff]
        %v1094 = vld [vmem:[#allocation10 + $0x1e0] sm:$0xff]
        %v1095 = vld [vmem:[#allocation10 + $0x1e8] sm:$0xff]
        %v1096 = vld [vmem:[#allocation10 + $0x1f0] sm:$0xff]
        %v1097 = vld [vmem:[#allocation10 + $0x1f8] sm:$0xff]
        %v1098 = vld [vmem:[%s8] sm:$0x3]
        %v1100 = vlaneseq
        %v1101 = vshrl.u32 %v1100, 7
        %v1102 = vsub.s32 0, %v1101
        %v1103 = vrot.slane %v1098, %v1102
        %v1104 = vlaneseq
        %v1105 = vshrl.u32 %v1104, 7
        %v1106 = vsub.s32 1, %v1105
        %v1107 = vrot.slane %v1098, %v1106
        %1110 = vmatprep.subr.mxu0 %v1065
        %1111 = vmatpush1.msra.mxu0 %v1064
        %1112 = vmatprep.subr.mxu0 %v1063
        %1113 = vmatpush1.msra.mxu0 %v1062
        %1114 = vmatprep.subr.mxu0 %v1061
        %1115 = vmatpush1.msra.mxu0 %v1060
        %1116 = vmatprep.subr.mxu0 %v1059
        %1117 = vmatpush1.msra.mxu0 %v1058
        %1118 = vmatprep.subr.mxu0 %v1057
        %1119 = vmatpush1.msra.mxu0 %v1056
        %1120 = vmatprep.subr.mxu0 %v1055
        %1121 = vmatpush1.msra.mxu0 %v1054
        %1122 = vmatprep.subr.mxu0 %v1053
        %1123 = vmatpush1.msra.mxu0 %v1052
        %1124 = vmatprep.subr.mxu0 %v1051
        %1125 = vmatpush1.msra.mxu0 %v1050
        %1126 = vmatprep.subr.mxu0 %v1049
        %1127 = vmatpush1.msra.mxu0 %v1048
        %1128 = vmatprep.subr.mxu0 %v1047
        %1129 = vmatpush1.msra.mxu0 %v1046
        %1130 = vmatprep.subr.mxu0 %v1045
        %1131 = vmatpush1.msra.mxu0 %v1044
        %1132 = vmatprep.subr.mxu0 %v1043
        %1133 = vmatpush1.msra.mxu0 %v1042
        %1134 = vmatprep.subr.mxu0 %v1041
        %1135 = vmatpush1.msra.mxu0 %v1040
        %1136 = vmatprep.subr.mxu0 %v1039
        %1137 = vmatpush1.msra.mxu0 %v1038
        %1138 = vmatprep.subr.mxu0 %v1037
        %1139 = vmatpush1.msra.mxu0 %v1036
        %1140 = vmatprep.subr.mxu0 %v1035
        %1141 = vmatpush1.msra.mxu0 %v1034
        %1142 = vmatprep.subr.mxu0 %v1097
        %1143 = vmatpush2.msra.mxu0 %v1096
        %1144 = vmatprep.subr.mxu0 %v1095
        %1145 = vmatpush2.msra.mxu0 %v1094
        %1146 = vmatprep.subr.mxu0 %v1093
        %1147 = vmatpush2.msra.mxu0 %v1092
        %1148 = vmatprep.subr.mxu0 %v1091
        %1149 = vmatpush2.msra.mxu0 %v1090
        %1150 = vmatprep.subr.mxu0 %v1089
        %1151 = vmatpush2.msra.mxu0 %v1088
        %1152 = vmatprep.subr.mxu0 %v1087
        %1153 = vmatpush2.msra.mxu0 %v1086
        %1154 = vmatprep.subr.mxu0 %v1085
        %1155 = vmatpush2.msra.mxu0 %v1084
        %1156 = vmatprep.subr.mxu0 %v1083
        %1157 = vmatpush2.msra.mxu0 %v1082
        %1158 = vmatprep.subr.mxu0 %v1081
        %1159 = vmatpush2.msra.mxu0 %v1080
        %1160 = vmatprep.subr.mxu0 %v1079
        %1161 = vmatpush2.msra.mxu0 %v1078
        %1162 = vmatprep.subr.mxu0 %v1077
        %1163 = vmatpush2.msra.mxu0 %v1076
        %1164 = vmatprep.subr.mxu0 %v1075
        %1165 = vmatpush2.msra.mxu0 %v1074
        %1166 = vmatprep.subr.mxu0 %v1073
        %1167 = vmatpush2.msra.mxu0 %v1072
        %1168 = vmatprep.subr.mxu0 %v1071
        %1169 = vmatpush2.msra.mxu0 %v1070
        %1170 = vmatprep.subr.mxu0 %v1069
        %1171 = vmatpush2.msra.mxu0 %v1068
        %1172 = vmatprep.subr.mxu0 %v1067
        %1173 = vmatpush2.msra.mxu0 %v1066
        %1174 = vmatprep.mubr.f32.mxu0 %v1033
        %1175 = vmatmul.mubr.f32.gmra.mxu0 %v1032
        %v1176 = vpop.f32.mrf.mxu0
        %v1177 = vadd.f32 %v1103, %v1176
        %v1178 = vpop.f32.mrf.mxu0
        %v1179 = vadd.f32 %v1107, %v1178
        %1180 = vdwg.mxu0
        %v1181 = vmul.f32 %v1177, 0.01
        %v1182 = vmul.f32 %v1179, 0.01
        %v1183 = vmax.f32 %v1177, %v1181
        %v1184 = vmax.f32 %v1179, %v1182
        %v1185 = vld [vmem:[#allocation11] sm:$0xff]
        %v1186 = vld [vmem:[#allocation11 + $0x8] sm:$0xff]
        %v1187 = vld [vmem:[#allocation11 + $0x10] sm:$0xff]
        %v1188 = vld [vmem:[#allocation11 + $0x18] sm:$0xff]
        %v1189 = vld [vmem:[#allocation11 + $0x20] sm:$0xff]
        %v1190 = vld [vmem:[#allocation11 + $0x28] sm:$0xff]
        %v1191 = vld [vmem:[#allocation11 + $0x30] sm:$0xff]
        %v1192 = vld [vmem:[#allocation11 + $0x38] sm:$0xff]
        %v1193 = vld [vmem:[#allocation11 + $0x40] sm:$0xff]
        %v1194 = vld [vmem:[#allocation11 + $0x48] sm:$0xff]
        %v1195 = vld [vmem:[#allocation11 + $0x50] sm:$0xff]
        %v1196 = vld [vmem:[#allocation11 + $0x58] sm:$0xff]
        %v1197 = vld [vmem:[#allocation11 + $0x60] sm:$0xff]
        %v1198 = vld [vmem:[#allocation11 + $0x68] sm:$0xff]
        %v1199 = vld [vmem:[#allocation11 + $0x70] sm:$0xff]
        %v1200 = vld [vmem:[#allocation11 + $0x78] sm:$0xff]
        %v1201 = vld [vmem:[#allocation11 + $0x80] sm:$0xff]
        %v1202 = vld [vmem:[#allocation11 + $0x88] sm:$0xff]
        %v1203 = vld [vmem:[#allocation11 + $0x90] sm:$0xff]
        %v1204 = vld [vmem:[#allocation11 + $0x98] sm:$0xff]
        %v1205 = vld [vmem:[#allocation11 + $0xa0] sm:$0xff]
        %v1206 = vld [vmem:[#allocation11 + $0xa8] sm:$0xff]
        %v1207 = vld [vmem:[#allocation11 + $0xb0] sm:$0xff]
        %v1208 = vld [vmem:[#allocation11 + $0xb8] sm:$0xff]
        %v1209 = vld [vmem:[#allocation11 + $0xc0] sm:$0xff]
        %v1210 = vld [vmem:[#allocation11 + $0xc8] sm:$0xff]
        %v1211 = vld [vmem:[#allocation11 + $0xd0] sm:$0xff]
        %v1212 = vld [vmem:[#allocation11 + $0xd8] sm:$0xff]
        %v1213 = vld [vmem:[#allocation11 + $0xe0] sm:$0xff]
        %v1214 = vld [vmem:[#allocation11 + $0xe8] sm:$0xff]
        %v1215 = vld [vmem:[#allocation11 + $0xf0] sm:$0xff]
        %v1216 = vld [vmem:[#allocation11 + $0xf8] sm:$0xff]
        %v1217 = vld [vmem:[#allocation11 + $0x100] sm:$0xff]
        %v1218 = vld [vmem:[#allocation11 + $0x108] sm:$0xff]
        %v1219 = vld [vmem:[#allocation11 + $0x110] sm:$0xff]
        %v1220 = vld [vmem:[#allocation11 + $0x118] sm:$0xff]
        %v1221 = vld [vmem:[#allocation11 + $0x120] sm:$0xff]
        %v1222 = vld [vmem:[#allocation11 + $0x128] sm:$0xff]
        %v1223 = vld [vmem:[#allocation11 + $0x130] sm:$0xff]
        %v1224 = vld [vmem:[#allocation11 + $0x138] sm:$0xff]
        %v1225 = vld [vmem:[#allocation11 + $0x140] sm:$0xff]
        %v1226 = vld [vmem:[#allocation11 + $0x148] sm:$0xff]
        %v1227 = vld [vmem:[#allocation11 + $0x150] sm:$0xff]
        %v1228 = vld [vmem:[#allocation11 + $0x158] sm:$0xff]
        %v1229 = vld [vmem:[#allocation11 + $0x160] sm:$0xff]
        %v1230 = vld [vmem:[#allocation11 + $0x168] sm:$0xff]
        %v1231 = vld [vmem:[#allocation11 + $0x170] sm:$0xff]
        %v1232 = vld [vmem:[#allocation11 + $0x178] sm:$0xff]
        %v1233 = vld [vmem:[#allocation11 + $0x180] sm:$0xff]
        %v1234 = vld [vmem:[#allocation11 + $0x188] sm:$0xff]
        %v1235 = vld [vmem:[#allocation11 + $0x190] sm:$0xff]
        %v1236 = vld [vmem:[#allocation11 + $0x198] sm:$0xff]
        %v1237 = vld [vmem:[#allocation11 + $0x1a0] sm:$0xff]
        %v1238 = vld [vmem:[#allocation11 + $0x1a8] sm:$0xff]
        %v1239 = vld [vmem:[#allocation11 + $0x1b0] sm:$0xff]
        %v1240 = vld [vmem:[#allocation11 + $0x1b8] sm:$0xff]
        %v1241 = vld [vmem:[#allocation11 + $0x1c0] sm:$0xff]
        %v1242 = vld [vmem:[#allocation11 + $0x1c8] sm:$0xff]
        %v1243 = vld [vmem:[#allocation11 + $0x1d0] sm:$0xff]
        %v1244 = vld [vmem:[#allocation11 + $0x1d8] sm:$0xff]
        %v1245 = vld [vmem:[#allocation11 + $0x1e0] sm:$0xff]
        %v1246 = vld [vmem:[#allocation11 + $0x1e8] sm:$0xff]
        %v1247 = vld [vmem:[#allocation11 + $0x1f0] sm:$0xff]
        %v1248 = vld [vmem:[#allocation11 + $0x1f8] sm:$0xff]
        %v1249 = vld [vmem:[%s10] sm:$0x3]
        %v1251 = vlaneseq
        %v1252 = vshrl.u32 %v1251, 7
        %v1253 = vsub.s32 0, %v1252
        %v1254 = vrot.slane %v1249, %v1253
        %v1255 = vlaneseq
        %v1256 = vshrl.u32 %v1255, 7
        %v1257 = vsub.s32 1, %v1256
        %v1258 = vrot.slane %v1249, %v1257
        %1261 = vmatprep.subr.mxu0 %v1216
        %1262 = vmatpush1.msra.mxu0 %v1215
        %1263 = vmatprep.subr.mxu0 %v1214
        %1264 = vmatpush1.msra.mxu0 %v1213
        %1265 = vmatprep.subr.mxu0 %v1212
        %1266 = vmatpush1.msra.mxu0 %v1211
        %1267 = vmatprep.subr.mxu0 %v1210
        %1268 = vmatpush1.msra.mxu0 %v1209
        %1269 = vmatprep.subr.mxu0 %v1208
        %1270 = vmatpush1.msra.mxu0 %v1207
        %1271 = vmatprep.subr.mxu0 %v1206
        %1272 = vmatpush1.msra.mxu0 %v1205
        %1273 = vmatprep.subr.mxu0 %v1204
        %1274 = vmatpush1.msra.mxu0 %v1203
        %1275 = vmatprep.subr.mxu0 %v1202
        %1276 = vmatpush1.msra.mxu0 %v1201
        %1277 = vmatprep.subr.mxu0 %v1200
        %1278 = vmatpush1.msra.mxu0 %v1199
        %1279 = vmatprep.subr.mxu0 %v1198
        %1280 = vmatpush1.msra.mxu0 %v1197
        %1281 = vmatprep.subr.mxu0 %v1196
        %1282 = vmatpush1.msra.mxu0 %v1195
        %1283 = vmatprep.subr.mxu0 %v1194
        %1284 = vmatpush1.msra.mxu0 %v1193
        %1285 = vmatprep.subr.mxu0 %v1192
        %1286 = vmatpush1.msra.mxu0 %v1191
        %1287 = vmatprep.subr.mxu0 %v1190
        %1288 = vmatpush1.msra.mxu0 %v1189
        %1289 = vmatprep.subr.mxu0 %v1188
        %1290 = vmatpush1.msra.mxu0 %v1187
        %1291 = vmatprep.subr.mxu0 %v1186
        %1292 = vmatpush1.msra.mxu0 %v1185
        %1293 = vmatprep.subr.mxu0 %v1248
        %1294 = vmatpush2.msra.mxu0 %v1247
        %1295 = vmatprep.subr.mxu0 %v1246
        %1296 = vmatpush2.msra.mxu0 %v1245
        %1297 = vmatprep.subr.mxu0 %v1244
        %1298 = vmatpush2.msra.mxu0 %v1243
        %1299 = vmatprep.subr.mxu0 %v1242
        %1300 = vmatpush2.msra.mxu0 %v1241
        %1301 = vmatprep.subr.mxu0 %v1240
        %1302 = vmatpush2.msra.mxu0 %v1239
        %1303 = vmatprep.subr.mxu0 %v1238
        %1304 = vmatpush2.msra.mxu0 %v1237
        %1305 = vmatprep.subr.mxu0 %v1236
        %1306 = vmatpush2.msra.mxu0 %v1235
        %1307 = vmatprep.subr.mxu0 %v1234
        %1308 = vmatpush2.msra.mxu0 %v1233
        %1309 = vmatprep.subr.mxu0 %v1232
        %1310 = vmatpush2.msra.mxu0 %v1231
        %1311 = vmatprep.subr.mxu0 %v1230
        %1312 = vmatpush2.msra.mxu0 %v1229
        %1313 = vmatprep.subr.mxu0 %v1228
        %1314 = vmatpush2.msra.mxu0 %v1227
        %1315 = vmatprep.subr.mxu0 %v1226
        %1316 = vmatpush2.msra.mxu0 %v1225
        %1317 = vmatprep.subr.mxu0 %v1224
        %1318 = vmatpush2.msra.mxu0 %v1223
        %1319 = vmatprep.subr.mxu0 %v1222
        %1320 = vmatpush2.msra.mxu0 %v1221
        %1321 = vmatprep.subr.mxu0 %v1220
        %1322 = vmatpush2.msra.mxu0 %v1219
        %1323 = vmatprep.subr.mxu0 %v1218
        %1324 = vmatpush2.msra.mxu0 %v1217
        %1325 = vmatprep.mubr.f32.mxu0 %v1184
        %1326 = vmatmul.mubr.f32.gmra.mxu0 %v1183
        %v1327 = vpop.f32.mrf.mxu0
        %v1328 = vadd.f32 %v1254, %v1327
        %v1329 = vpop.f32.mrf.mxu0
        %v1330 = vadd.f32 %v1258, %v1329
        %1331 = vdwg.mxu0
        %v1332 = vmul.f32 %v1328, 0.01
        %v1333 = vmul.f32 %v1330, 0.01
        %v1334 = vmax.f32 %v1328, %v1332
        %v1335 = vmax.f32 %v1330, %v1333
        %v1336 = vld [vmem:[#allocation13] sm:$0xff]
        %v1337 = vld [vmem:[#allocation13 + $0x8] sm:$0xff]
        %v1338 = vld [vmem:[#allocation13 + $0x10] sm:$0xff]
        %v1339 = vld [vmem:[#allocation13 + $0x18] sm:$0xff]
        %v1340 = vld [vmem:[#allocation13 + $0x20] sm:$0xff]
        %v1341 = vld [vmem:[#allocation13 + $0x28] sm:$0xff]
        %v1342 = vld [vmem:[#allocation13 + $0x30] sm:$0xff]
        %v1343 = vld [vmem:[#allocation13 + $0x38] sm:$0xff]
        %v1344 = vld [vmem:[#allocation13 + $0x40] sm:$0xff]
        %v1345 = vld [vmem:[#allocation13 + $0x48] sm:$0xff]
        %v1346 = vld [vmem:[#allocation13 + $0x50] sm:$0xff]
        %v1347 = vld [vmem:[#allocation13 + $0x58] sm:$0xff]
        %v1348 = vld [vmem:[#allocation13 + $0x60] sm:$0xff]
        %v1349 = vld [vmem:[#allocation13 + $0x68] sm:$0xff]
        %v1350 = vld [vmem:[#allocation13 + $0x70] sm:$0xff]
        %v1351 = vld [vmem:[#allocation13 + $0x78] sm:$0xff]
        %v1352 = vld [vmem:[#allocation13 + $0x80] sm:$0xff]
        %v1353 = vld [vmem:[#allocation13 + $0x88] sm:$0xff]
        %v1354 = vld [vmem:[#allocation13 + $0x90] sm:$0xff]
        %v1355 = vld [vmem:[#allocation13 + $0x98] sm:$0xff]
        %v1356 = vld [vmem:[#allocation13 + $0xa0] sm:$0xff]
        %v1357 = vld [vmem:[#allocation13 + $0xa8] sm:$0xff]
        %v1358 = vld [vmem:[#allocation13 + $0xb0] sm:$0xff]
        %v1359 = vld [vmem:[#allocation13 + $0xb8] sm:$0xff]
        %v1360 = vld [vmem:[#allocation13 + $0xc0] sm:$0xff]
        %v1361 = vld [vmem:[#allocation13 + $0xc8] sm:$0xff]
        %v1362 = vld [vmem:[#allocation13 + $0xd0] sm:$0xff]
        %v1363 = vld [vmem:[#allocation13 + $0xd8] sm:$0xff]
        %v1364 = vld [vmem:[#allocation13 + $0xe0] sm:$0xff]
        %v1365 = vld [vmem:[#allocation13 + $0xe8] sm:$0xff]
        %v1366 = vld [vmem:[#allocation13 + $0xf0] sm:$0xff]
        %v1367 = vld [vmem:[#allocation13 + $0xf8] sm:$0xff]
        %v1368 = vld [vmem:[#allocation13 + $0x100] sm:$0xff]
        %v1369 = vld [vmem:[#allocation13 + $0x108] sm:$0xff]
        %v1370 = vld [vmem:[#allocation13 + $0x110] sm:$0xff]
        %v1371 = vld [vmem:[#allocation13 + $0x118] sm:$0xff]
        %v1372 = vld [vmem:[#allocation13 + $0x120] sm:$0xff]
        %v1373 = vld [vmem:[#allocation13 + $0x128] sm:$0xff]
        %v1374 = vld [vmem:[#allocation13 + $0x130] sm:$0xff]
        %v1375 = vld [vmem:[#allocation13 + $0x138] sm:$0xff]
        %v1376 = vld [vmem:[#allocation13 + $0x140] sm:$0xff]
        %v1377 = vld [vmem:[#allocation13 + $0x148] sm:$0xff]
        %v1378 = vld [vmem:[#allocation13 + $0x150] sm:$0xff]
        %v1379 = vld [vmem:[#allocation13 + $0x158] sm:$0xff]
        %v1380 = vld [vmem:[#allocation13 + $0x160] sm:$0xff]
        %v1381 = vld [vmem:[#allocation13 + $0x168] sm:$0xff]
        %v1382 = vld [vmem:[#allocation13 + $0x170] sm:$0xff]
        %v1383 = vld [vmem:[#allocation13 + $0x178] sm:$0xff]
        %v1384 = vld [vmem:[#allocation13 + $0x180] sm:$0xff]
        %v1385 = vld [vmem:[#allocation13 + $0x188] sm:$0xff]
        %v1386 = vld [vmem:[#allocation13 + $0x190] sm:$0xff]
        %v1387 = vld [vmem:[#allocation13 + $0x198] sm:$0xff]
        %v1388 = vld [vmem:[#allocation13 + $0x1a0] sm:$0xff]
        %v1389 = vld [vmem:[#allocation13 + $0x1a8] sm:$0xff]
        %v1390 = vld [vmem:[#allocation13 + $0x1b0] sm:$0xff]
        %v1391 = vld [vmem:[#allocation13 + $0x1b8] sm:$0xff]
        %v1392 = vld [vmem:[#allocation13 + $0x1c0] sm:$0xff]
        %v1393 = vld [vmem:[#allocation13 + $0x1c8] sm:$0xff]
        %v1394 = vld [vmem:[#allocation13 + $0x1d0] sm:$0xff]
        %v1395 = vld [vmem:[#allocation13 + $0x1d8] sm:$0xff]
        %v1396 = vld [vmem:[#allocation13 + $0x1e0] sm:$0xff]
        %v1397 = vld [vmem:[#allocation13 + $0x1e8] sm:$0xff]
        %v1398 = vld [vmem:[#allocation13 + $0x1f0] sm:$0xff]
        %v1399 = vld [vmem:[#allocation13 + $0x1f8] sm:$0xff]
        %v1400 = vld [vmem:[%s12] sm:$0x3]
        %v1402 = vlaneseq
        %v1403 = vshrl.u32 %v1402, 7
        %v1404 = vsub.s32 0, %v1403
        %v1405 = vrot.slane %v1400, %v1404
        %v1406 = vlaneseq
        %v1407 = vshrl.u32 %v1406, 7
        %v1408 = vsub.s32 1, %v1407
        %v1409 = vrot.slane %v1400, %v1408
        %1412 = vmatprep.subr.mxu0 %v1367
        %1413 = vmatpush1.msra.mxu0 %v1366
        %1414 = vmatprep.subr.mxu0 %v1365
        %1415 = vmatpush1.msra.mxu0 %v1364
        %1416 = vmatprep.subr.mxu0 %v1363
        %1417 = vmatpush1.msra.mxu0 %v1362
        %1418 = vmatprep.subr.mxu0 %v1361
        %1419 = vmatpush1.msra.mxu0 %v1360
        %1420 = vmatprep.subr.mxu0 %v1359
        %1421 = vmatpush1.msra.mxu0 %v1358
        %1422 = vmatprep.subr.mxu0 %v1357
        %1423 = vmatpush1.msra.mxu0 %v1356
        %1424 = vmatprep.subr.mxu0 %v1355
        %1425 = vmatpush1.msra.mxu0 %v1354
        %1426 = vmatprep.subr.mxu0 %v1353
        %1427 = vmatpush1.msra.mxu0 %v1352
        %1428 = vmatprep.subr.mxu0 %v1351
        %1429 = vmatpush1.msra.mxu0 %v1350
        %1430 = vmatprep.subr.mxu0 %v1349
        %1431 = vmatpush1.msra.mxu0 %v1348
        %1432 = vmatprep.subr.mxu0 %v1347
        %1433 = vmatpush1.msra.mxu0 %v1346
        %1434 = vmatprep.subr.mxu0 %v1345
        %1435 = vmatpush1.msra.mxu0 %v1344
        %1436 = vmatprep.subr.mxu0 %v1343
        %1437 = vmatpush1.msra.mxu0 %v1342
        %1438 = vmatprep.subr.mxu0 %v1341
        %1439 = vmatpush1.msra.mxu0 %v1340
        %1440 = vmatprep.subr.mxu0 %v1339
        %1441 = vmatpush1.msra.mxu0 %v1338
        %1442 = vmatprep.subr.mxu0 %v1337
        %1443 = vmatpush1.msra.mxu0 %v1336
        %1444 = vmatprep.subr.mxu0 %v1399
        %1445 = vmatpush2.msra.mxu0 %v1398
        %1446 = vmatprep.subr.mxu0 %v1397
        %1447 = vmatpush2.msra.mxu0 %v1396
        %1448 = vmatprep.subr.mxu0 %v1395
        %1449 = vmatpush2.msra.mxu0 %v1394
        %1450 = vmatprep.subr.mxu0 %v1393
        %1451 = vmatpush2.msra.mxu0 %v1392
        %1452 = vmatprep.subr.mxu0 %v1391
        %1453 = vmatpush2.msra.mxu0 %v1390
        %1454 = vmatprep.subr.mxu0 %v1389
        %1455 = vmatpush2.msra.mxu0 %v1388
        %1456 = vmatprep.subr.mxu0 %v1387
        %1457 = vmatpush2.msra.mxu0 %v1386
        %1458 = vmatprep.subr.mxu0 %v1385
        %1459 = vmatpush2.msra.mxu0 %v1384
        %1460 = vmatprep.subr.mxu0 %v1383
        %1461 = vmatpush2.msra.mxu0 %v1382
        %1462 = vmatprep.subr.mxu0 %v1381
        %1463 = vmatpush2.msra.mxu0 %v1380
        %1464 = vmatprep.subr.mxu0 %v1379
        %1465 = vmatpush2.msra.mxu0 %v1378
        %1466 = vmatprep.subr.mxu0 %v1377
        %1467 = vmatpush2.msra.mxu0 %v1376
        %1468 = vmatprep.subr.mxu0 %v1375
        %1469 = vmatpush2.msra.mxu0 %v1374
        %1470 = vmatprep.subr.mxu0 %v1373
        %1471 = vmatpush2.msra.mxu0 %v1372
        %1472 = vmatprep.subr.mxu0 %v1371
        %1473 = vmatpush2.msra.mxu0 %v1370
        %1474 = vmatprep.subr.mxu0 %v1369
        %1475 = vmatpush2.msra.mxu0 %v1368
        %1476 = vmatprep.mubr.f32.mxu0 %v1335
        %1477 = vmatmul.mubr.f32.gmra.mxu0 %v1334
        %v1478 = vpop.f32.mrf.mxu0
        %v1479 = vadd.f32 %v1405, %v1478
        %v1480 = vpop.f32.mrf.mxu0
        %v1481 = vadd.f32 %v1409, %v1480
        %1482 = vdwg.mxu0
        %v1483 = vmul.f32 %v1479, 0.01
        %v1484 = vmul.f32 %v1481, 0.01
        %v1485 = vmax.f32 %v1479, %v1483
        %v1486 = vmax.f32 %v1481, %v1484
        %v1487 = vld [vmem:[#allocation14] sm:$0xff]
        %v1488 = vld [vmem:[#allocation14 + $0x8] sm:$0xff]
        %v1489 = vld [vmem:[#allocation14 + $0x10] sm:$0xff]
        %v1490 = vld [vmem:[#allocation14 + $0x18] sm:$0xff]
        %v1491 = vld [vmem:[#allocation14 + $0x20] sm:$0xff]
        %v1492 = vld [vmem:[#allocation14 + $0x28] sm:$0xff]
        %v1493 = vld [vmem:[#allocation14 + $0x30] sm:$0xff]
        %v1494 = vld [vmem:[#allocation14 + $0x38] sm:$0xff]
        %v1495 = vld [vmem:[#allocation14 + $0x40] sm:$0xff]
        %v1496 = vld [vmem:[#allocation14 + $0x48] sm:$0xff]
        %v1497 = vld [vmem:[#allocation14 + $0x50] sm:$0xff]
        %v1498 = vld [vmem:[#allocation14 + $0x58] sm:$0xff]
        %v1499 = vld [vmem:[#allocation14 + $0x60] sm:$0xff]
        %v1500 = vld [vmem:[#allocation14 + $0x68] sm:$0xff]
        %v1501 = vld [vmem:[#allocation14 + $0x70] sm:$0xff]
        %v1502 = vld [vmem:[#allocation14 + $0x78] sm:$0xff]
        %v1503 = vld [vmem:[#allocation14 + $0x80] sm:$0xff]
        %v1504 = vld [vmem:[#allocation14 + $0x88] sm:$0xff]
        %v1505 = vld [vmem:[#allocation14 + $0x90] sm:$0xff]
        %v1506 = vld [vmem:[#allocation14 + $0x98] sm:$0xff]
        %v1507 = vld [vmem:[#allocation14 + $0xa0] sm:$0xff]
        %v1508 = vld [vmem:[#allocation14 + $0xa8] sm:$0xff]
        %v1509 = vld [vmem:[#allocation14 + $0xb0] sm:$0xff]
        %v1510 = vld [vmem:[#allocation14 + $0xb8] sm:$0xff]
        %v1511 = vld [vmem:[#allocation14 + $0xc0] sm:$0xff]
        %v1512 = vld [vmem:[#allocation14 + $0xc8] sm:$0xff]
        %v1513 = vld [vmem:[#allocation14 + $0xd0] sm:$0xff]
        %v1514 = vld [vmem:[#allocation14 + $0xd8] sm:$0xff]
        %v1515 = vld [vmem:[#allocation14 + $0xe0] sm:$0xff]
        %v1516 = vld [vmem:[#allocation14 + $0xe8] sm:$0xff]
        %v1517 = vld [vmem:[#allocation14 + $0xf0] sm:$0xff]
        %v1518 = vld [vmem:[#allocation14 + $0xf8] sm:$0xff]
        %v1519 = vld [vmem:[%s14] sm:$0x1]
        %v1521 = vlaneseq
        %v1522 = vshrl.u32 %v1521, 7
        %v1523 = vsub.s32 0, %v1522
        %v1524 = vrot.slane %v1519, %v1523
        %1526 = vmatprep.subr.mxu0 0.0
        %1527 = vmatpush1.msra.mxu0 %v1502
        %1528 = vmatprep.subr.mxu0 0.0
        %1529 = vmatpush1.msra.mxu0 %v1501
        %1530 = vmatprep.subr.mxu0 0.0
        %1531 = vmatpush1.msra.mxu0 %v1500
        %1532 = vmatprep.subr.mxu0 0.0
        %1533 = vmatpush1.msra.mxu0 %v1499
        %1534 = vmatprep.subr.mxu0 0.0
        %1535 = vmatpush1.msra.mxu0 %v1498
        %1536 = vmatprep.subr.mxu0 0.0
        %1537 = vmatpush1.msra.mxu0 %v1497
        %1538 = vmatprep.subr.mxu0 0.0
        %1539 = vmatpush1.msra.mxu0 %v1496
        %1540 = vmatprep.subr.mxu0 0.0
        %1541 = vmatpush1.msra.mxu0 %v1495
        %1542 = vmatprep.subr.mxu0 0.0
        %1543 = vmatpush1.msra.mxu0 %v1494
        %1544 = vmatprep.subr.mxu0 0.0
        %1545 = vmatpush1.msra.mxu0 %v1493
        %1546 = vmatprep.subr.mxu0 0.0
        %1547 = vmatpush1.msra.mxu0 %v1492
        %1548 = vmatprep.subr.mxu0 0.0
        %1549 = vmatpush1.msra.mxu0 %v1491
        %1550 = vmatprep.subr.mxu0 0.0
        %1551 = vmatpush1.msra.mxu0 %v1490
        %1552 = vmatprep.subr.mxu0 0.0
        %1553 = vmatpush1.msra.mxu0 %v1489
        %1554 = vmatprep.subr.mxu0 0.0
        %1555 = vmatpush1.msra.mxu0 %v1488
        %1556 = vmatprep.subr.mxu0 0.0
        %1557 = vmatpush1.msra.mxu0 %v1487
        %1558 = vmatprep.subr.mxu0 0.0
        %1559 = vmatpush2.msra.mxu0 %v1518
        %1560 = vmatprep.subr.mxu0 0.0
        %1561 = vmatpush2.msra.mxu0 %v1517
        %1562 = vmatprep.subr.mxu0 0.0
        %1563 = vmatpush2.msra.mxu0 %v1516
        %1564 = vmatprep.subr.mxu0 0.0
        %1565 = vmatpush2.msra.mxu0 %v1515
        %1566 = vmatprep.subr.mxu0 0.0
        %1567 = vmatpush2.msra.mxu0 %v1514
        %1568 = vmatprep.subr.mxu0 0.0
        %1569 = vmatpush2.msra.mxu0 %v1513
        %1570 = vmatprep.subr.mxu0 0.0
        %1571 = vmatpush2.msra.mxu0 %v1512
        %1572 = vmatprep.subr.mxu0 0.0
        %1573 = vmatpush2.msra.mxu0 %v1511
        %1574 = vmatprep.subr.mxu0 0.0
        %1575 = vmatpush2.msra.mxu0 %v1510
        %1576 = vmatprep.subr.mxu0 0.0
        %1577 = vmatpush2.msra.mxu0 %v1509
        %1578 = vmatprep.subr.mxu0 0.0
        %1579 = vmatpush2.msra.mxu0 %v1508
        %1580 = vmatprep.subr.mxu0 0.0
        %1581 = vmatpush2.msra.mxu0 %v1507
        %1582 = vmatprep.subr.mxu0 0.0
        %1583 = vmatpush2.msra.mxu0 %v1506
        %1584 = vmatprep.subr.mxu0 0.0
        %1585 = vmatpush2.msra.mxu0 %v1505
        %1586 = vmatprep.subr.mxu0 0.0
        %1587 = vmatpush2.msra.mxu0 %v1504
        %1588 = vmatprep.subr.mxu0 0.0
        %1589 = vmatpush2.msra.mxu0 %v1503
        %1590 = vmatprep.mubr.f32.mxu0 %v1486
        %1591 = vmatmul.mubr.f32.gmra.mxu0 %v1485
        %v1592 = vpop.f32.mrf.mxu0
        %v1593 = vadd.f32 %v1524, %v1592
        %v1594 = vpop.f32.mrf.mxu0
        %1595 = vdwg.mxu0
        %v1596 = vmul.f32 %v1593, 0.001
        %v1597 = vmul.f32 %v612, 0.12565053
        %v1598 = vsub.f32 0.07708444, %v1597
        %v1599 = vlaneseq
        %v1600 = vand.u32 %v1599, 127
        %vm1601 = vcmp.eq.s32.totalorder %v1600, 1
        %1603 = vset.pattern.permute.xlu0 2
        %1604 = vperm.xlu0 %1603, %v1598
        %v1605 = vpop.permute.xlu0 %1604
        %v1607 = vsel %vm1601, %v1605, %v1596
        %1608 = vst [vmem:[%s611] sm:$0xff] %v1607
        %s1609 = sand.u32 %s364, 1
        %s1610 = scalar_lea.sflag [#allocation4], %s1609
        %s1611 = sand.u32 %s364, 1
        %s1612 = smul.addr %s1611, 8
        %s1613 = scalar_lea.vmem [#allocation16], %s1612
        // Predicated region
        $region113: #{tpu_custom_call.1} parent=79 // pred_check
          %p1614 = pneg %p374
        $region114: #{tpu_custom_call.1} parent=79 // pred_check_branch
          %1616 = sbr.rel (%p1614) target = $region116
        $region115: #{tpu_custom_call.1} parent=79 // pred_region
          %s1618 = ssub.s32 128, 128
          %1619 = vsyncadd %s1610, %s1618
          %s1620 = smul.addr %s36, 128
          %s1621 = scalar_lea.hbm %s15, %s1620
          %s1623 = sshll.u32 %s1613, 4
          %s1624 = int_to_ptr.vmem [resolvable:$true] %s1623
          %1626 = dma.vmem_to_hbm [thread:$0]  %s1624, 128, %s1621, %s1610
        $region116: #{tpu_custom_call.1} parent=79 // pred_fallthru
          _
      $region80: #{tpu_custom_call.1} parent=5 // pred_fallthru
        _
      %p1627 = scmp.le.s32.totalorder 2, %s31
      // Predicated region
      $region117: #{tpu_custom_call.1} parent=5 // pred_check
        %p1628 = pneg %p1627
      $region118: #{tpu_custom_call.1} parent=5 // pred_check_branch
        %1630 = sbr.rel (%p1628) target = $region120
      $region119: #{tpu_custom_call.1} parent=5 // pred_region
        %s1631 = ssub.s32 %s31, 2
        // Predicated region
        $region121: #{tpu_custom_call.1} parent=119 // pred_check
          %p1632 = pneg %p380
        $region122: #{tpu_custom_call.1} parent=119 // pred_check_branch
          %1634 = sbr.rel (%p1632) target = $region124
        $region123: #{tpu_custom_call.1} parent=119 // pred_region
          %s1635 = sand.u32 %s365, 1
          %s1636 = scalar_lea.sflag [#allocation4], %s1635
          %s1637 = sand.u32 %s365, 1
          %s1638 = smul.addr %s1637, 8
          %s1639 = scalar_lea.vmem [#allocation16], %s1638
          %1640 = dma.done %s1636, 128
        $region124: #{tpu_custom_call.1} parent=119 // pred_fallthru
          _
      $region120: #{tpu_custom_call.1} parent=5 // pred_fallthru
        _
    $region6: #{tpu_custom_call.1} parent=1 // loop_footer
      %s35 = sadd.s32 1, %s31
    $region7: #{tpu_custom_call.1} parent=1 // loop_footer_branch
      %30 = sbr.rel target = $region3
    $region8: #{tpu_custom_call.1} parent=1 // loop_exit
      _
    %1641 = vsyncpa [#allocation3], 1
    %s1642 = scalar_lea.sflag [#allocation3], 1
    %1643 = vsyncpa %s1642, 1
    %1644 = vsyncpa [#allocation6], 1
    %1645 = vsyncpa [#allocation9], 1
    %1646 = vsyncpa [#allocation12], 1
    %1647 = vsyncpa [#allocation15], 1
    %1648 = vsyncpa [#allocation4], 1
    %s1649 = scalar_lea.sflag [#allocation4], 1
    %1650 = vsyncpa %s1649, 1

</llo_original>
